<compile_context>
chip_gen: v7x
topology: tpu7x:2x2x1
jax: 0.10.0
libtpu: 0.0.40
codegen_flags: <defaults>
</compile_context>

<pallas_src>
import jax
import jax.numpy as jnp
from jax.experimental import pallas as pl
from jax.experimental.pallas import tpu as pltpu

# -------------------- model hyperparameters (small, synthetic) --------------
B, S, D = 2, 8, 32          # batch, seq len, d_model
H = 4                       # attention heads
DK = D // H                 # per-head dim
DFF = 64                    # feed-forward hidden dim
EPS = 1e-5                  # nn.LayerNorm default eps


# -------------------- in-kernel helpers --------------------------------------
def _layernorm(x, gamma, beta):
    # x: (S, D) f32 ; gamma/beta: (1, D)
    mu = jnp.mean(x, axis=-1, keepdims=True)
    var = jnp.mean((x - mu) ** 2, axis=-1, keepdims=True)
    return (x - mu) * jax.lax.rsqrt(var + EPS) * gamma + beta


# -------------------- fused encoder-layer kernel ------------------------------
def encoder_layer_kernel(x_ref, mb_ref, wqkv_ref, bqkv_ref, wo_ref, vecs_ref,
                         w1_ref, b1_ref, w2_ref, o_ref):
    # one grid step == one batch element; residual stream never leaves VMEM
    x = x_ref[0]                          # (S, D) f32
    mask_bias = mb_ref[0]                 # (S, S) f32 additive bias (0 / -1e9)
    vecs = vecs_ref[...]                  # (6, D): [g1, be1, bo, g2, be2, b2]
    g1, be1 = vecs[0:1], vecs[1:2]
    bo = vecs[2:3]
    g2, be2 = vecs[3:4], vecs[4:5]
    b2 = vecs[5:6]

    # ---- sublayer 0: x + SelfAttn(LN(x), mask) -------------------------------
    xn = _layernorm(x, g1, be1)           # (S, D)

    # fused QKV projection: single lane-dense MXU pass.
    # (1/sqrt(DK) already folded into the q columns of wqkv / bqkv.)
    qkv = jnp.dot(xn, wqkv_ref[...],
                  preferred_element_type=jnp.float32) + bqkv_ref[...]   # (S, 3D)

    def split_heads(block):               # (S, D) -> (H, S, DK), head-major
        return jnp.stack(
            [block[:, h * DK:(h + 1) * DK] for h in range(H)], axis=0)

    qh = split_heads(qkv[:, 0:D])
    kh = split_heads(qkv[:, D:2 * D])
    vh = split_heads(qkv[:, 2 * D:3 * D])

    # batched-over-heads attention (mask add, softmax, matmuls done once)
    s = jnp.einsum('hqd,hkd->hqk', qh, kh,
                   preferred_element_type=jnp.float32)       # (H, S, S)
    s = s + mask_bias[None, :, :]                            # hoisted additive mask
    m = jnp.max(s, axis=-1, keepdims=True)
    e = jnp.exp(s - m)
    p = e * pl.reciprocal(jnp.sum(e, axis=-1, keepdims=True), approx=False)
    oh = jnp.einsum('hqk,hkd->hqd', p, vh,
                    preferred_element_type=jnp.float32)      # (H, S, DK)

    # concat heads back onto lanes -> single fused output projection
    concat = jnp.concatenate([oh[h] for h in range(H)], axis=-1)   # (S, D)
    attn = jnp.dot(concat, wo_ref[...],
                   preferred_element_type=jnp.float32) + bo
    x = x + attn                          # residual (dropout = identity)

    # ---- sublayer 1: x + FFN(LN(x)) -------------------------------------------
    xn2 = _layernorm(x, g2, be2)
    hdn = jnp.maximum(
        jnp.dot(xn2, w1_ref[...], preferred_element_type=jnp.float32) + b1_ref[...],
        0.0)
    out = jnp.dot(hdn, w2_ref[...], preferred_element_type=jnp.float32) + b2
    # TODO(synk): at real shapes keep the last dim a multiple of 128 so this
    #             store is lane-dense (unmasked vst); D=32 is toy-shape only.
    o_ref[0] = (x + out).astype(o_ref.dtype)  # residual


# -------------------- pallas_call wrapper --------------------------------------
def encoder_layer(x, mask, attn_params, ffn_params):
    wq, bq, wk, bk, wv, bv, wo, bo, g1, be1 = attn_params
    w1, b1, w2, b2, g2, be2 = ffn_params

    scale = jnp.float32(1.0 / (DK ** 0.5))
    # fused, lane-dense QKV weights; scale folded into the q columns (free here)
    wqkv = jnp.concatenate([wq * scale, wk, wv], axis=1)             # (D, 3D)
    bqkv = jnp.concatenate([bq * scale, bk, bv]).reshape(1, 3 * D)   # (1, 3D)
    vecs = jnp.stack([g1, be1, bo, g2, be2, b2], axis=0)             # (6, D)
    mask_bias = jnp.where(mask == 0, jnp.float32(-1e9),
                          jnp.float32(0.0))                          # (B, S, S)

    full = lambda shape: pl.BlockSpec(shape, lambda b: (0,) * len(shape))

    out = pl.pallas_call(
        encoder_layer_kernel,
        out_shape=jax.ShapeDtypeStruct((B, S, D), x.dtype),
        grid=(B,),
        in_specs=[
            pl.BlockSpec((1, S, D), lambda b: (b, 0, 0)),    # x (per-batch block)
            pl.BlockSpec((1, S, S), lambda b: (b, 0, 0)),    # mask bias
            full((D, 3 * D)),                                # wqkv (VMEM-resident)
            full((1, 3 * D)),                                # bqkv
            full((D, D)),                                    # wo
            full((6, D)),                                    # gammas/betas/biases
            full((D, DFF)),                                  # w1
            full((1, DFF)),                                  # b1
            full((DFF, D)),                                  # w2
        ],
        out_specs=pl.BlockSpec((1, S, D), lambda b: (b, 0, 0)),
        compiler_params=pltpu.CompilerParams(
            dimension_semantics=("parallel",),               # 2 TCs on v7x
            vmem_limit_bytes=32 * 1024 * 1024),
    )(x, mask_bias, wqkv, bqkv, wo, vecs, w1, b1.reshape(1, DFF), w2)

    return out


# -------------------- pure-JAX reference for verification --------------------
def _ref_layernorm(x, g, b):
    mu = jnp.mean(x, axis=-1, keepdims=True)
    var = jnp.mean((x - mu) ** 2, axis=-1, keepdims=True)
    return (x - mu) / jnp.sqrt(var + EPS) * g + b


def encoder_layer_ref(x, mask, attn_params, ffn_params):
    wq, bq, wk, bk, wv, bv, wo, bo, g1, be1 = attn_params
    w1, b1, w2, b2, g2, be2 = ffn_params
    xn = _ref_layernorm(x, g1, be1)
    q = xn @ wq + bq
    k = xn @ wk + bk
    v = xn @ wv + bv
    q = q.reshape(B, S, H, DK).transpose(0, 2, 1, 3)
    k = k.reshape(B, S, H, DK).transpose(0, 2, 1, 3)
    v = v.reshape(B, S, H, DK).transpose(0, 2, 1, 3)
    scores = jnp.einsum("bhqd,bhkd->bhqk", q, k) / jnp.sqrt(jnp.float32(DK))
    scores = jnp.where(mask[:, None, :, :] == 0, -1e9, scores)
    p = jax.nn.softmax(scores, axis=-1)
    o = jnp.einsum("bhqk,bhkd->bhqd", p, v).transpose(0, 2, 1, 3).reshape(B, S, D)
    x = x + (o @ wo + bo)
    xn = _ref_layernorm(x, g2, be2)
    h = jnp.maximum(xn @ w1 + b1, 0.0)
    return x + (h @ w2 + b2)


# -------------------- parameter init (deterministic, synthetic) --------------
def init_params(key):
    ks = jax.random.split(key, 8)
    std = 0.02
    wq = jax.random.normal(ks[0], (D, D), jnp.float32) * std
    wk = jax.random.normal(ks[1], (D, D), jnp.float32) * std
    wv = jax.random.normal(ks[2], (D, D), jnp.float32) * std
    wo = jax.random.normal(ks[3], (D, D), jnp.float32) * std
    bq = jnp.zeros((D,), jnp.float32)
    bk = jnp.zeros((D,), jnp.float32)
    bv = jnp.zeros((D,), jnp.float32)
    bo = jax.random.normal(ks[4], (D,), jnp.float32) * std
    g1 = jnp.ones((D,), jnp.float32)
    be1 = jnp.zeros((D,), jnp.float32)
    attn_params = (wq, bq, wk, bk, wv, bv, wo, bo, g1, be1)

    w1 = jax.random.normal(ks[5], (D, DFF), jnp.float32) * std
    b1 = jax.random.normal(ks[6], (DFF,), jnp.float32) * std
    w2 = jax.random.normal(ks[7], (DFF, D), jnp.float32) * std
    b2 = jnp.zeros((D,), jnp.float32)
    g2 = jnp.ones((D,), jnp.float32)
    be2 = jnp.zeros((D,), jnp.float32)
    ffn_params = (w1, b1, w2, b2, g2, be2)
    return attn_params, ffn_params


# -------------------- main ----------------------------------------------------
if __name__ == "__main__":
    key = jax.random.PRNGKey(0)
    kx, kp = jax.random.split(key)
    x = jax.random.normal(kx, (B, S, D), jnp.float32)
    # causal-style mask (1 = keep, 0 = masked), shared across heads
    mask = jnp.broadcast_to(
        jnp.tril(jnp.ones((S, S), jnp.int32)), (B, S, S)).astype(jnp.int32)

    attn_params, ffn_params = init_params(kp)

    out = encoder_layer(x, mask, attn_params, ffn_params)
    out = jax.block_until_ready(out)

    ref = encoder_layer_ref(x, mask, attn_params, ffn_params)
    assert out.shape == (B, S, D)
    assert jnp.allclose(out, ref, rtol=1e-3, atol=1e-3), "mismatch vs JAX reference"

    print("KERNEL_OK")
</pallas_src>

<mosaic_0001>
module attributes {stable_mosaic.version = 11 : i64} {
  func.func @encoder_layer_kernel(%arg0: i32, %arg1: memref<1x8x32xf32, #tpu.memory_space<vmem>>, %arg2: memref<1x8x8xf32, #tpu.memory_space<vmem>>, %arg3: memref<32x96xf32, #tpu.memory_space<vmem>>, %arg4: memref<1x96xf32, #tpu.memory_space<vmem>>, %arg5: memref<32x32xf32, #tpu.memory_space<vmem>>, %arg6: memref<6x32xf32, #tpu.memory_space<vmem>>, %arg7: memref<32x64xf32, #tpu.memory_space<vmem>>, %arg8: memref<1x64xf32, #tpu.memory_space<vmem>>, %arg9: memref<64x32xf32, #tpu.memory_space<vmem>>, %arg10: memref<1x8x32xf32, #tpu.memory_space<vmem>>) attributes {dimension_semantics = [#tpu.dimension_semantics<parallel>], iteration_bounds = array<i64: 2>, scalar_prefetch = 0 : i64, scratch_operands = 0 : i64, tpu.core_type = #tpu.core_type<tc>, window_params = [{transform_indices = @transform_0, window_bounds = array<i64: 1, 8, 32>}, {transform_indices = @transform_1, window_bounds = array<i64: 1, 8, 8>}, {pipeline_mode = #tpu.pipeline_mode<synchronous>, transform_indices = @transform_2, window_bounds = array<i64: 32, 96>}, {pipeline_mode = #tpu.pipeline_mode<synchronous>, transform_indices = @transform_3, window_bounds = array<i64: 1, 96>}, {pipeline_mode = #tpu.pipeline_mode<synchronous>, transform_indices = @transform_4, window_bounds = array<i64: 32, 32>}, {pipeline_mode = #tpu.pipeline_mode<synchronous>, transform_indices = @transform_5, window_bounds = array<i64: 6, 32>}, {pipeline_mode = #tpu.pipeline_mode<synchronous>, transform_indices = @transform_6, window_bounds = array<i64: 32, 64>}, {pipeline_mode = #tpu.pipeline_mode<synchronous>, transform_indices = @transform_7, window_bounds = array<i64: 1, 64>}, {pipeline_mode = #tpu.pipeline_mode<synchronous>, transform_indices = @transform_8, window_bounds = array<i64: 64, 32>}, {transform_indices = @transform_9, window_bounds = array<i64: 1, 8, 32>}]} {
    %c0 = arith.constant 0 : index
    %c0_0 = arith.constant 0 : index
    %c0_1 = arith.constant 0 : index
    %0 = vector.load %arg1[%c0, %c0_0, %c0_1] : memref<1x8x32xf32, #tpu.memory_space<vmem>>, vector<1x8x32xf32>
    %1 = vector.shape_cast %0 : vector<1x8x32xf32> to vector<8x32xf32>
    %c0_2 = arith.constant 0 : index
    %c0_3 = arith.constant 0 : index
    %c0_4 = arith.constant 0 : index
    %2 = vector.load %arg2[%c0_2, %c0_3, %c0_4] : memref<1x8x8xf32, #tpu.memory_space<vmem>>, vector<1x8x8xf32>
    %3 = vector.shape_cast %2 : vector<1x8x8xf32> to vector<8x8xf32>
    %c0_5 = arith.constant 0 : index
    %c0_6 = arith.constant 0 : index
    %4 = vector.load %arg6[%c0_5, %c0_6] : memref<6x32xf32, #tpu.memory_space<vmem>>, vector<6x32xf32>
    %5 = vector.extract_strided_slice %4 {offsets = [0, 0], sizes = [1, 32], strides = [1, 1]} : vector<6x32xf32> to vector<1x32xf32>
    %6 = vector.extract_strided_slice %4 {offsets = [1, 0], sizes = [1, 32], strides = [1, 1]} : vector<6x32xf32> to vector<1x32xf32>
    %7 = vector.extract_strided_slice %4 {offsets = [2, 0], sizes = [1, 32], strides = [1, 1]} : vector<6x32xf32> to vector<1x32xf32>
    %8 = vector.extract_strided_slice %4 {offsets = [3, 0], sizes = [1, 32], strides = [1, 1]} : vector<6x32xf32> to vector<1x32xf32>
    %9 = vector.extract_strided_slice %4 {offsets = [4, 0], sizes = [1, 32], strides = [1, 1]} : vector<6x32xf32> to vector<1x32xf32>
    %10 = vector.extract_strided_slice %4 {offsets = [5, 0], sizes = [1, 32], strides = [1, 1]} : vector<6x32xf32> to vector<1x32xf32>
    %cst = arith.constant dense<0.000000e+00> : vector<8xf32>
    %11 = vector.multi_reduction <add>, %1, %cst [1] : vector<8x32xf32> to vector<8xf32>
    %12 = vector.shape_cast %11 : vector<8xf32> to vector<8x1xf32>
    %cst_7 = arith.constant 3.200000e+01 : f32
    %13 = vector.broadcast %cst_7 : f32 to vector<8x1xf32>
    %14 = arith.divf %12, %13 : vector<8x1xf32>
    %15 = vector.broadcast %14 : vector<8x1xf32> to vector<8x32xf32>
    %16 = arith.subf %1, %15 : vector<8x32xf32>
    %17 = arith.mulf %16, %16 : vector<8x32xf32>
    %cst_8 = arith.constant dense<0.000000e+00> : vector<8xf32>
    %18 = vector.multi_reduction <add>, %17, %cst_8 [1] : vector<8x32xf32> to vector<8xf32>
    %19 = vector.shape_cast %18 : vector<8xf32> to vector<8x1xf32>
    %cst_9 = arith.constant 3.200000e+01 : f32
    %20 = vector.broadcast %cst_9 : f32 to vector<8x1xf32>
    %21 = arith.divf %19, %20 : vector<8x1xf32>
    %22 = vector.broadcast %14 : vector<8x1xf32> to vector<8x32xf32>
    %23 = arith.subf %1, %22 : vector<8x32xf32>
    %cst_10 = arith.constant 9.99999974E-6 : f32
    %24 = vector.broadcast %cst_10 : f32 to vector<8x1xf32>
    %25 = arith.addf %21, %24 : vector<8x1xf32>
    %26 = math.rsqrt %25 : vector<8x1xf32>
    %27 = vector.broadcast %26 : vector<8x1xf32> to vector<8x32xf32>
    %28 = arith.mulf %23, %27 : vector<8x32xf32>
    %29 = vector.broadcast %5 : vector<1x32xf32> to vector<8x32xf32>
    %30 = arith.mulf %28, %29 : vector<8x32xf32>
    %31 = vector.broadcast %6 : vector<1x32xf32> to vector<8x32xf32>
    %32 = arith.addf %30, %31 : vector<8x32xf32>
    %c0_11 = arith.constant 0 : index
    %c0_12 = arith.constant 0 : index
    %33 = vector.load %arg3[%c0_11, %c0_12] : memref<32x96xf32, #tpu.memory_space<vmem>>, vector<32x96xf32>
    %cst_13 = arith.constant dense<0.000000e+00> : vector<8x96xf32>
    %34 = tpu.matmul %32, %33, %cst_13 {dimension_numbers = #tpu.dot_dimension_numbers<[1], [0], [0], [1], [0, 0, 1, 1], [], []>} : vector<8x32xf32>, vector<32x96xf32>, vector<8x96xf32> -> vector<8x96xf32>
    %c0_14 = arith.constant 0 : index
    %c0_15 = arith.constant 0 : index
    %35 = vector.load %arg4[%c0_14, %c0_15] : memref<1x96xf32, #tpu.memory_space<vmem>>, vector<1x96xf32>
    %36 = vector.broadcast %35 : vector<1x96xf32> to vector<8x96xf32>
    %37 = arith.addf %34, %36 : vector<8x96xf32>
    %38 = vector.extract_strided_slice %37 {offsets = [0, 0], sizes = [8, 32], strides = [1, 1]} : vector<8x96xf32> to vector<8x32xf32>
    %39 = vector.extract_strided_slice %38 {offsets = [0, 0], sizes = [8, 8], strides = [1, 1]} : vector<8x32xf32> to vector<8x8xf32>
    %40 = vector.extract_strided_slice %38 {offsets = [0, 8], sizes = [8, 8], strides = [1, 1]} : vector<8x32xf32> to vector<8x8xf32>
    %41 = vector.extract_strided_slice %38 {offsets = [0, 16], sizes = [8, 8], strides = [1, 1]} : vector<8x32xf32> to vector<8x8xf32>
    %42 = vector.extract_strided_slice %38 {offsets = [0, 24], sizes = [8, 8], strides = [1, 1]} : vector<8x32xf32> to vector<8x8xf32>
    %43 = vector.shape_cast %39 : vector<8x8xf32> to vector<1x8x8xf32>
    %44 = vector.shape_cast %40 : vector<8x8xf32> to vector<1x8x8xf32>
    %45 = vector.shape_cast %41 : vector<8x8xf32> to vector<1x8x8xf32>
    %46 = vector.shape_cast %42 : vector<8x8xf32> to vector<1x8x8xf32>
    %47 = tpu.concatenate %43, %44, %45, %46 in 0 : vector<1x8x8xf32>, vector<1x8x8xf32>, vector<1x8x8xf32>, vector<1x8x8xf32> -> vector<4x8x8xf32>
    %48 = vector.extract_strided_slice %37 {offsets = [0, 32], sizes = [8, 32], strides = [1, 1]} : vector<8x96xf32> to vector<8x32xf32>
    %49 = vector.extract_strided_slice %48 {offsets = [0, 0], sizes = [8, 8], strides = [1, 1]} : vector<8x32xf32> to vector<8x8xf32>
    %50 = vector.extract_strided_slice %48 {offsets = [0, 8], sizes = [8, 8], strides = [1, 1]} : vector<8x32xf32> to vector<8x8xf32>
    %51 = vector.extract_strided_slice %48 {offsets = [0, 16], sizes = [8, 8], strides = [1, 1]} : vector<8x32xf32> to vector<8x8xf32>
    %52 = vector.extract_strided_slice %48 {offsets = [0, 24], sizes = [8, 8], strides = [1, 1]} : vector<8x32xf32> to vector<8x8xf32>
    %53 = vector.shape_cast %49 : vector<8x8xf32> to vector<1x8x8xf32>
    %54 = vector.shape_cast %50 : vector<8x8xf32> to vector<1x8x8xf32>
    %55 = vector.shape_cast %51 : vector<8x8xf32> to vector<1x8x8xf32>
    %56 = vector.shape_cast %52 : vector<8x8xf32> to vector<1x8x8xf32>
    %57 = tpu.concatenate %53, %54, %55, %56 in 0 : vector<1x8x8xf32>, vector<1x8x8xf32>, vector<1x8x8xf32>, vector<1x8x8xf32> -> vector<4x8x8xf32>
    %58 = vector.extract_strided_slice %37 {offsets = [0, 64], sizes = [8, 32], strides = [1, 1]} : vector<8x96xf32> to vector<8x32xf32>
    %59 = vector.extract_strided_slice %58 {offsets = [0, 0], sizes = [8, 8], strides = [1, 1]} : vector<8x32xf32> to vector<8x8xf32>
    %60 = vector.extract_strided_slice %58 {offsets = [0, 8], sizes = [8, 8], strides = [1, 1]} : vector<8x32xf32> to vector<8x8xf32>
    %61 = vector.extract_strided_slice %58 {offsets = [0, 16], sizes = [8, 8], strides = [1, 1]} : vector<8x32xf32> to vector<8x8xf32>
    %62 = vector.extract_strided_slice %58 {offsets = [0, 24], sizes = [8, 8], strides = [1, 1]} : vector<8x32xf32> to vector<8x8xf32>
    %63 = vector.shape_cast %59 : vector<8x8xf32> to vector<1x8x8xf32>
    %64 = vector.shape_cast %60 : vector<8x8xf32> to vector<1x8x8xf32>
    %65 = vector.shape_cast %61 : vector<8x8xf32> to vector<1x8x8xf32>
    %66 = vector.shape_cast %62 : vector<8x8xf32> to vector<1x8x8xf32>
    %67 = tpu.concatenate %63, %64, %65, %66 in 0 : vector<1x8x8xf32>, vector<1x8x8xf32>, vector<1x8x8xf32>, vector<1x8x8xf32> -> vector<4x8x8xf32>
    "tpu.trace_start"() <{level = 10 : i32, message = "hqd,hkd->hqk"}> : () -> ()
    %cst_16 = arith.constant dense<0.000000e+00> : vector<4x8x8xf32>
    %68 = tpu.matmul %47, %57, %cst_16 {dimension_numbers = #tpu.dot_dimension_numbers<[2], [2], [1], [1], [0, 0, 0, 1, 1, 1], [0], [0]>} : vector<4x8x8xf32>, vector<4x8x8xf32>, vector<4x8x8xf32> -> vector<4x8x8xf32>
    "tpu.trace_stop"() : () -> ()
    %69 = vector.shape_cast %3 : vector<8x8xf32> to vector<1x8x8xf32>
    %70 = vector.broadcast %69 : vector<1x8x8xf32> to vector<4x8x8xf32>
    %71 = arith.addf %68, %70 : vector<4x8x8xf32>
    %cst_17 = arith.constant dense<0xFF800000> : vector<4x8xf32>
    %72 = vector.multi_reduction <maximumf>, %71, %cst_17 [2] : vector<4x8x8xf32> to vector<4x8xf32>
    %73 = vector.shape_cast %72 : vector<4x8xf32> to vector<4x8x1xf32>
    %74 = vector.broadcast %73 : vector<4x8x1xf32> to vector<4x8x8xf32>
    %75 = arith.subf %71, %74 : vector<4x8x8xf32>
    %76 = math.exp %75 : vector<4x8x8xf32>
    %cst_18 = arith.constant dense<0.000000e+00> : vector<4x8xf32>
    %77 = vector.multi_reduction <add>, %76, %cst_18 [2] : vector<4x8x8xf32> to vector<4x8xf32>
    %78 = vector.shape_cast %77 : vector<4x8xf32> to vector<4x8x1xf32>
    %79 = tpu.reciprocal %78 : vector<4x8x1xf32> -> vector<4x8x1xf32>
    %80 = vector.broadcast %79 : vector<4x8x1xf32> to vector<4x8x8xf32>
    %81 = arith.mulf %76, %80 : vector<4x8x8xf32>
    "tpu.trace_start"() <{level = 10 : i32, message = "hqk,hkd->hqd"}> : () -> ()
    %cst_19 = arith.constant dense<0.000000e+00> : vector<4x8x8xf32>
    %82 = tpu.matmul %81, %67, %cst_19 {dimension_numbers = #tpu.dot_dimension_numbers<[2], [1], [1], [2], [0, 0, 0, 1, 1, 2], [0], [0]>} : vector<4x8x8xf32>, vector<4x8x8xf32>, vector<4x8x8xf32> -> vector<4x8x8xf32>
    "tpu.trace_stop"() : () -> ()
    %83 = vector.extract_strided_slice %82 {offsets = [0, 0, 0], sizes = [1, 8, 8], strides = [1, 1, 1]} : vector<4x8x8xf32> to vector<1x8x8xf32>
    %84 = vector.shape_cast %83 : vector<1x8x8xf32> to vector<8x8xf32>
    %85 = vector.extract_strided_slice %82 {offsets = [1, 0, 0], sizes = [1, 8, 8], strides = [1, 1, 1]} : vector<4x8x8xf32> to vector<1x8x8xf32>
    %86 = vector.shape_cast %85 : vector<1x8x8xf32> to vector<8x8xf32>
    %87 = vector.extract_strided_slice %82 {offsets = [2, 0, 0], sizes = [1, 8, 8], strides = [1, 1, 1]} : vector<4x8x8xf32> to vector<1x8x8xf32>
    %88 = vector.shape_cast %87 : vector<1x8x8xf32> to vector<8x8xf32>
    %89 = vector.extract_strided_slice %82 {offsets = [3, 0, 0], sizes = [1, 8, 8], strides = [1, 1, 1]} : vector<4x8x8xf32> to vector<1x8x8xf32>
    %90 = vector.shape_cast %89 : vector<1x8x8xf32> to vector<8x8xf32>
    %91 = tpu.concatenate %84, %86, %88, %90 in 1 : vector<8x8xf32>, vector<8x8xf32>, vector<8x8xf32>, vector<8x8xf32> -> vector<8x32xf32>
    %c0_20 = arith.constant 0 : index
    %c0_21 = arith.constant 0 : index
    %92 = vector.load %arg5[%c0_20, %c0_21] : memref<32x32xf32, #tpu.memory_space<vmem>>, vector<32x32xf32>
    %cst_22 = arith.constant dense<0.000000e+00> : vector<8x32xf32>
    %93 = tpu.matmul %91, %92, %cst_22 {dimension_numbers = #tpu.dot_dimension_numbers<[1], [0], [0], [1], [0, 0, 1, 1], [], []>} : vector<8x32xf32>, vector<32x32xf32>, vector<8x32xf32> -> vector<8x32xf32>
    %94 = vector.broadcast %7 : vector<1x32xf32> to vector<8x32xf32>
    %95 = arith.addf %93, %94 : vector<8x32xf32>
    %96 = arith.addf %1, %95 : vector<8x32xf32>
    %cst_23 = arith.constant dense<0.000000e+00> : vector<8xf32>
    %97 = vector.multi_reduction <add>, %96, %cst_23 [1] : vector<8x32xf32> to vector<8xf32>
    %98 = vector.shape_cast %97 : vector<8xf32> to vector<8x1xf32>
    %cst_24 = arith.constant 3.200000e+01 : f32
    %99 = vector.broadcast %cst_24 : f32 to vector<8x1xf32>
    %100 = arith.divf %98, %99 : vector<8x1xf32>
    %101 = vector.broadcast %100 : vector<8x1xf32> to vector<8x32xf32>
    %102 = arith.subf %96, %101 : vector<8x32xf32>
    %103 = arith.mulf %102, %102 : vector<8x32xf32>
    %cst_25 = arith.constant dense<0.000000e+00> : vector<8xf32>
    %104 = vector.multi_reduction <add>, %103, %cst_25 [1] : vector<8x32xf32> to vector<8xf32>
    %105 = vector.shape_cast %104 : vector<8xf32> to vector<8x1xf32>
    %cst_26 = arith.constant 3.200000e+01 : f32
    %106 = vector.broadcast %cst_26 : f32 to vector<8x1xf32>
    %107 = arith.divf %105, %106 : vector<8x1xf32>
    %108 = vector.broadcast %100 : vector<8x1xf32> to vector<8x32xf32>
    %109 = arith.subf %96, %108 : vector<8x32xf32>
    %cst_27 = arith.constant 9.99999974E-6 : f32
    %110 = vector.broadcast %cst_27 : f32 to vector<8x1xf32>
    %111 = arith.addf %107, %110 : vector<8x1xf32>
    %112 = math.rsqrt %111 : vector<8x1xf32>
    %113 = vector.broadcast %112 : vector<8x1xf32> to vector<8x32xf32>
    %114 = arith.mulf %109, %113 : vector<8x32xf32>
    %115 = vector.broadcast %8 : vector<1x32xf32> to vector<8x32xf32>
    %116 = arith.mulf %114, %115 : vector<8x32xf32>
    %117 = vector.broadcast %9 : vector<1x32xf32> to vector<8x32xf32>
    %118 = arith.addf %116, %117 : vector<8x32xf32>
    %c0_28 = arith.constant 0 : index
    %c0_29 = arith.constant 0 : index
    %119 = vector.load %arg7[%c0_28, %c0_29] : memref<32x64xf32, #tpu.memory_space<vmem>>, vector<32x64xf32>
    %cst_30 = arith.constant dense<0.000000e+00> : vector<8x64xf32>
    %120 = tpu.matmul %118, %119, %cst_30 {dimension_numbers = #tpu.dot_dimension_numbers<[1], [0], [0], [1], [0, 0, 1, 1], [], []>} : vector<8x32xf32>, vector<32x64xf32>, vector<8x64xf32> -> vector<8x64xf32>
    %c0_31 = arith.constant 0 : index
    %c0_32 = arith.constant 0 : index
    %121 = vector.load %arg8[%c0_31, %c0_32] : memref<1x64xf32, #tpu.memory_space<vmem>>, vector<1x64xf32>
    %122 = vector.broadcast %121 : vector<1x64xf32> to vector<8x64xf32>
    %123 = arith.addf %120, %122 : vector<8x64xf32>
    %cst_33 = arith.constant 0.000000e+00 : f32
    %124 = vector.broadcast %cst_33 : f32 to vector<8x64xf32>
    %125 = arith.maximumf %123, %124 : vector<8x64xf32>
    %c0_34 = arith.constant 0 : index
    %c0_35 = arith.constant 0 : index
    %126 = vector.load %arg9[%c0_34, %c0_35] : memref<64x32xf32, #tpu.memory_space<vmem>>, vector<64x32xf32>
    %cst_36 = arith.constant dense<0.000000e+00> : vector<8x32xf32>
    %127 = tpu.matmul %125, %126, %cst_36 {dimension_numbers = #tpu.dot_dimension_numbers<[1], [0], [0], [1], [0, 0, 1, 1], [], []>} : vector<8x64xf32>, vector<64x32xf32>, vector<8x32xf32> -> vector<8x32xf32>
    %128 = vector.broadcast %10 : vector<1x32xf32> to vector<8x32xf32>
    %129 = arith.addf %127, %128 : vector<8x32xf32>
    %130 = arith.addf %96, %129 : vector<8x32xf32>
    %c0_37 = arith.constant 0 : index
    %c0_38 = arith.constant 0 : index
    %c0_39 = arith.constant 0 : index
    %131 = vector.load %arg10[%c0_37, %c0_38, %c0_39] : memref<1x8x32xf32, #tpu.memory_space<vmem>>, vector<1x8x32xf32>
    %132 = vector.shape_cast %131 : vector<1x8x32xf32> to vector<8x32xf32>
    %133 = vector.shape_cast %130 : vector<8x32xf32> to vector<1x8x32xf32>
    tpu.vector_store %arg10[%c0_37, %c0_38, %c0_39], %133 {strides = array<i32>} : memref<1x8x32xf32, #tpu.memory_space<vmem>>, vector<1x8x32xf32>,
    return
  }
  func.func @transform_0(%arg0: i32) -> (i32, i32, i32) {
    %c0_i32 = arith.constant 0 : i32
    %c0_i32_0 = arith.constant 0 : i32
    %c0_i32_1 = arith.constant 0 : i32
    return %arg0, %c0_i32, %c0_i32_0 : i32, i32, i32
  }
  func.func @transform_1(%arg0: i32) -> (i32, i32, i32) {
    %c0_i32 = arith.constant 0 : i32
    %c0_i32_0 = arith.constant 0 : i32
    %c0_i32_1 = arith.constant 0 : i32
    return %arg0, %c0_i32, %c0_i32_0 : i32, i32, i32
  }
  func.func @transform_2(%arg0: i32) -> (i32, i32) {
    %c0_i32 = arith.constant 0 : i32
    %c0_i32_0 = arith.constant 0 : i32
    %c0_i32_1 = arith.constant 0 : i32
    return %c0_i32, %c0_i32_0 : i32, i32
  }
  func.func @transform_3(%arg0: i32) -> (i32, i32) {
    %c0_i32 = arith.constant 0 : i32
    %c0_i32_0 = arith.constant 0 : i32
    %c0_i32_1 = arith.constant 0 : i32
    return %c0_i32, %c0_i32_0 : i32, i32
  }
  func.func @transform_4(%arg0: i32) -> (i32, i32) {
    %c0_i32 = arith.constant 0 : i32
    %c0_i32_0 = arith.constant 0 : i32
    %c0_i32_1 = arith.constant 0 : i32
    return %c0_i32, %c0_i32_0 : i32, i32
  }
  func.func @transform_5(%arg0: i32) -> (i32, i32) {
    %c0_i32 = arith.constant 0 : i32
    %c0_i32_0 = arith.constant 0 : i32
    %c0_i32_1 = arith.constant 0 : i32
    return %c0_i32, %c0_i32_0 : i32, i32
  }
  func.func @transform_6(%arg0: i32) -> (i32, i32) {
    %c0_i32 = arith.constant 0 : i32
    %c0_i32_0 = arith.constant 0 : i32
    %c0_i32_1 = arith.constant 0 : i32
    return %c0_i32, %c0_i32_0 : i32, i32
  }
  func.func @transform_7(%arg0: i32) -> (i32, i32) {
    %c0_i32 = arith.constant 0 : i32
    %c0_i32_0 = arith.constant 0 : i32
    %c0_i32_1 = arith.constant 0 : i32
    return %c0_i32, %c0_i32_0 : i32, i32
  }
  func.func @transform_8(%arg0: i32) -> (i32, i32) {
    %c0_i32 = arith.constant 0 : i32
    %c0_i32_0 = arith.constant 0 : i32
    %c0_i32_1 = arith.constant 0 : i32
    return %c0_i32, %c0_i32_0 : i32, i32
  }
  func.func @transform_9(%arg0: i32) -> (i32, i32, i32) {
    %c0_i32 = arith.constant 0 : i32
    %c0_i32_0 = arith.constant 0 : i32
    %c0_i32_1 = arith.constant 0 : i32
    return %arg0, %c0_i32, %c0_i32_0 : i32, i32, i32
  }
}

</mosaic_0001>

<llo_original>
// kernel: tpu_custom_call.1
$region0: #{tpu_custom_call.1}
  #allocation0 [shape = 'u32[]', space=smem, size = 0x4, offset = 0x4, fixed_abs, tag = 'smem constant byte address 0x4 - core index']
  #allocation1 [shape = 'u32[144,128]{1,0:T(1,128)}', space=vmem, size = 0x12000, scoped, tag = 'internal scratch']
  %s0 = inlined_call_operand.hbm [shape: f32[2,8,32], index: 0, kind: input, shape index: {}]
  %s1 = inlined_call_operand.hbm [shape: f32[2,8,8], index: 1, kind: input, shape index: {}]
  %s2 = inlined_call_operand.vmem [shape: f32[32,96], index: 2, kind: input, shape index: {}]
  %s3 = inlined_call_operand.vmem [shape: f32[1,96], index: 3, kind: input, shape index: {}]
  %s4 = inlined_call_operand.vmem [shape: f32[32,32], index: 4, kind: input, shape index: {}]
  %s5 = inlined_call_operand.vmem [shape: f32[6,32], index: 5, kind: input, shape index: {}]
  %s6 = inlined_call_operand.vmem [shape: f32[32,64], index: 6, kind: input, shape index: {}]
  %s7 = inlined_call_operand.vmem [shape: f32[1,64], index: 7, kind: input, shape index: {}]
  %s8 = inlined_call_operand.vmem [shape: f32[64,32], index: 8, kind: input, shape index: {}]
  %s9 = inlined_call_operand.hbm [shape: f32[2,8,32], index: 9, kind: output, shape index: {}]
  %s10 = sld [smem:[#allocation0]]
  $region77: #{tpu_custom_call.1} parent=0
    _
  %s12 = ssub.s32 1, %s10
  %s13 = scalar_select 0, %s12, %s10
  $region1: #{tpu_custom_call.1} parent=0
    #allocation2 [shape = 'u8[8192]{0}', space=vmem, size = 0x2000, scoped, tag = 'input window, operand 0']
    #allocation3 [shape = 's32[2]{0}', space=sflag, size = 0x8, scoped, tag = 'scoped memory for tpu_custom_call.1']
    #allocation4 [shape = 's32[2]{0}', space=sflag, size = 0x8, scoped, tag = 'scoped memory for tpu_custom_call.1']
    #allocation5 [shape = 'u8[8192]{0}', space=vmem, size = 0x2000, scoped, tag = 'input window, operand 1']
    #allocation6 [shape = 's32[2]{0}', space=sflag, size = 0x8, scoped, tag = 'scoped memory for tpu_custom_call.1']
    #allocation7 [shape = 'u8[8192]{0}', space=vmem, size = 0x2000, scoped, tag = 'output window, operand 0']
    %14 = vsyncpa [#allocation3], 0
    %s15 = scalar_lea.sflag [#allocation3], 1
    %16 = vsyncpa %s15, 0
    %17 = vsyncpa [#allocation6], 0
    %s18 = scalar_lea.sflag [#allocation6], 1
    %19 = vsyncpa %s18, 0
    %20 = vsyncpa [#allocation4], 0
    %s21 = scalar_lea.sflag [#allocation4], 1
    %22 = vsyncpa %s21, 0
    loop: start=0, step=1, limit=4
    $region2: #{tpu_custom_call.1} parent=1 // loop_pre_header
      _
    $region3: #{tpu_custom_call.1} parent=1 // loop_header
      %s24 = sphi 0, %s28
      %p25 = scmp.ge.s32.totalorder %s24, 4
      %s34 = sphi 0, %s36
      %s37 = sphi 0, %s34
      %s38 = sphi 0, %s37
      %s54 = sphi 0, %s38
      %s60 = sphi 0, %s62
      %s63 = sphi 0, %s60
      %s64 = sphi 0, %s63
      %s80 = sphi 0, %s64
      %s84 = sphi 0, %s84
      %s86 = sphi 0, %s84
      %s87 = sphi 0, %s86
      %s101 = sphi 0, %s87
      %s105 = sphi 0, %s105
      %s107 = sphi 0, %s105
      %s108 = sphi 0, %s107
      %s122 = sphi 0, %s108
      %s126 = sphi 0, %s126
      %s128 = sphi 0, %s126
      %s129 = sphi 0, %s128
      %s143 = sphi 0, %s129
      %s147 = sphi 0, %s147
      %s149 = sphi 0, %s147
      %s150 = sphi 0, %s149
      %s164 = sphi 0, %s150
      %s168 = sphi 0, %s168
      %s170 = sphi 0, %s168
      %s171 = sphi 0, %s170
      %s185 = sphi 0, %s171
      %s189 = sphi 0, %s189
      %s191 = sphi 0, %s189
      %s192 = sphi 0, %s191
      %s206 = sphi 0, %s192
      %s210 = sphi 0, %s210
      %s212 = sphi 0, %s210
      %s213 = sphi 0, %s212
      %s227 = sphi 0, %s213
      %s233 = sphi 0, %s235
      %s236 = sphi 0, %s233
      %s237 = sphi 0, %s236
      %s253 = sphi 0, %s237
    $region4: #{tpu_custom_call.1} parent=1 // loop_header_branch
      %27 = sbr.rel (%p25) target = $region8
    $region5: #{tpu_custom_call.1} parent=1 // loop_body
      %s29 = ssub.s32 %s24, 1
      %s30 = ssub.s32 %s24, 2
      %s31 = sadd.s32 %s24, 1
      %s32 = ssub.s32 %s24, %s31
      %p33 = scmp.eq.s32.totalorder %s32, 0
      %s35 = sadd.s32 %s34, 1
      %s36 = scalar_select %p33, %s34, %s35
      %p39 = pneg %p33
      %p40 = scmp.eq.s32.totalorder %s24, 1
      %p41 = por %p39, %p40
      %p42 = scmp.ne.s32.totalorder %s34, %s37
      %p43 = scmp.eq.s32.totalorder %s24, 0
      %p44 = por %p42, %p43
      %p45 = scmp.ne.s32.totalorder %s34, %s37
      %p46 = scmp.eq.s32.totalorder %s29, 1
      %p47 = por %p45, %p46
      %p48 = scmp.ne.s32.totalorder %s37, %s38
      %p49 = scmp.eq.s32.totalorder %s29, 0
      %p50 = por %p48, %p49
      %p51 = scmp.ne.s32.totalorder %s37, %s38
      %p52 = scmp.eq.s32.totalorder %s30, 1
      %p53 = por %p51, %p52
      %p55 = scmp.ne.s32.totalorder %s38, %s54
      %p56 = scmp.eq.s32.totalorder %s30, 0
      %p57 = por %p55, %p56
      %s58 = ssub.s32 %s24, %s31
      %p59 = scmp.eq.s32.totalorder %s58, 0
      %s61 = sadd.s32 %s60, 1
      %s62 = scalar_select %p59, %s60, %s61
      %p65 = pneg %p59
      %p66 = scmp.eq.s32.totalorder %s24, 1
      %p67 = por %p65, %p66
      %p68 = scmp.ne.s32.totalorder %s60, %s63
      %p69 = scmp.eq.s32.totalorder %s24, 0
      %p70 = por %p68, %p69
      %p71 = scmp.ne.s32.totalorder %s60, %s63
      %p72 = scmp.eq.s32.totalorder %s29, 1
      %p73 = por %p71, %p72
      %p74 = scmp.ne.s32.totalorder %s63, %s64
      %p75 = scmp.eq.s32.totalorder %s29, 0
      %p76 = por %p74, %p75
      %p77 = scmp.ne.s32.totalorder %s63, %s64
      %p78 = scmp.eq.s32.totalorder %s30, 1
      %p79 = por %p77, %p78
      %p81 = scmp.ne.s32.totalorder %s64, %s80
      %p82 = scmp.eq.s32.totalorder %s30, 0
      %p83 = por %p81, %p82
      %s85 = sadd.s32 %s84, 1
      %p88 = scmp.eq.s32.totalorder %s24, 1
      %p89 = scmp.ne.s32.totalorder %s84, %s86
      %p90 = scmp.eq.s32.totalorder %s24, 0
      %p91 = por %p89, %p90
      %p92 = scmp.ne.s32.totalorder %s84, %s86
      %p93 = scmp.eq.s32.totalorder %s29, 1
      %p94 = por %p92, %p93
      %p95 = scmp.ne.s32.totalorder %s86, %s87
      %p96 = scmp.eq.s32.totalorder %s29, 0
      %p97 = por %p95, %p96
      %p98 = scmp.ne.s32.totalorder %s86, %s87
      %p99 = scmp.eq.s32.totalorder %s30, 1
      %p100 = por %p98, %p99
      %p102 = scmp.ne.s32.totalorder %s87, %s101
      %p103 = scmp.eq.s32.totalorder %s30, 0
      %p104 = por %p102, %p103
      %s106 = sadd.s32 %s105, 1
      %p109 = scmp.eq.s32.totalorder %s24, 1
      %p110 = scmp.ne.s32.totalorder %s105, %s107
      %p111 = scmp.eq.s32.totalorder %s24, 0
      %p112 = por %p110, %p111
      %p113 = scmp.ne.s32.totalorder %s105, %s107
      %p114 = scmp.eq.s32.totalorder %s29, 1
      %p115 = por %p113, %p114
      %p116 = scmp.ne.s32.totalorder %s107, %s108
      %p117 = scmp.eq.s32.totalorder %s29, 0
      %p118 = por %p116, %p117
      %p119 = scmp.ne.s32.totalorder %s107, %s108
      %p120 = scmp.eq.s32.totalorder %s30, 1
      %p121 = por %p119, %p120
      %p123 = scmp.ne.s32.totalorder %s108, %s122
      %p124 = scmp.eq.s32.totalorder %s30, 0
      %p125 = por %p123, %p124
      %s127 = sadd.s32 %s126, 1
      %p130 = scmp.eq.s32.totalorder %s24, 1
      %p131 = scmp.ne.s32.totalorder %s126, %s128
      %p132 = scmp.eq.s32.totalorder %s24, 0
      %p133 = por %p131, %p132
      %p134 = scmp.ne.s32.totalorder %s126, %s128
      %p135 = scmp.eq.s32.totalorder %s29, 1
      %p136 = por %p134, %p135
      %p137 = scmp.ne.s32.totalorder %s128, %s129
      %p138 = scmp.eq.s32.totalorder %s29, 0
      %p139 = por %p137, %p138
      %p140 = scmp.ne.s32.totalorder %s128, %s129
      %p141 = scmp.eq.s32.totalorder %s30, 1
      %p142 = por %p140, %p141
      %p144 = scmp.ne.s32.totalorder %s129, %s143
      %p145 = scmp.eq.s32.totalorder %s30, 0
      %p146 = por %p144, %p145
      %s148 = sadd.s32 %s147, 1
      %p151 = scmp.eq.s32.totalorder %s24, 1
      %p152 = scmp.ne.s32.totalorder %s147, %s149
      %p153 = scmp.eq.s32.totalorder %s24, 0
      %p154 = por %p152, %p153
      %p155 = scmp.ne.s32.totalorder %s147, %s149
      %p156 = scmp.eq.s32.totalorder %s29, 1
      %p157 = por %p155, %p156
      %p158 = scmp.ne.s32.totalorder %s149, %s150
      %p159 = scmp.eq.s32.totalorder %s29, 0
      %p160 = por %p158, %p159
      %p161 = scmp.ne.s32.totalorder %s149, %s150
      %p162 = scmp.eq.s32.totalorder %s30, 1
      %p163 = por %p161, %p162
      %p165 = scmp.ne.s32.totalorder %s150, %s164
      %p166 = scmp.eq.s32.totalorder %s30, 0
      %p167 = por %p165, %p166
      %s169 = sadd.s32 %s168, 1
      %p172 = scmp.eq.s32.totalorder %s24, 1
      %p173 = scmp.ne.s32.totalorder %s168, %s170
      %p174 = scmp.eq.s32.totalorder %s24, 0
      %p175 = por %p173, %p174
      %p176 = scmp.ne.s32.totalorder %s168, %s170
      %p177 = scmp.eq.s32.totalorder %s29, 1
      %p178 = por %p176, %p177
      %p179 = scmp.ne.s32.totalorder %s170, %s171
      %p180 = scmp.eq.s32.totalorder %s29, 0
      %p181 = por %p179, %p180
      %p182 = scmp.ne.s32.totalorder %s170, %s171
      %p183 = scmp.eq.s32.totalorder %s30, 1
      %p184 = por %p182, %p183
      %p186 = scmp.ne.s32.totalorder %s171, %s185
      %p187 = scmp.eq.s32.totalorder %s30, 0
      %p188 = por %p186, %p187
      %s190 = sadd.s32 %s189, 1
      %p193 = scmp.eq.s32.totalorder %s24, 1
      %p194 = scmp.ne.s32.totalorder %s189, %s191
      %p195 = scmp.eq.s32.totalorder %s24, 0
      %p196 = por %p194, %p195
      %p197 = scmp.ne.s32.totalorder %s189, %s191
      %p198 = scmp.eq.s32.totalorder %s29, 1
      %p199 = por %p197, %p198
      %p200 = scmp.ne.s32.totalorder %s191, %s192
      %p201 = scmp.eq.s32.totalorder %s29, 0
      %p202 = por %p200, %p201
      %p203 = scmp.ne.s32.totalorder %s191, %s192
      %p204 = scmp.eq.s32.totalorder %s30, 1
      %p205 = por %p203, %p204
      %p207 = scmp.ne.s32.totalorder %s192, %s206
      %p208 = scmp.eq.s32.totalorder %s30, 0
      %p209 = por %p207, %p208
      %s211 = sadd.s32 %s210, 1
      %p214 = scmp.eq.s32.totalorder %s24, 1
      %p215 = scmp.ne.s32.totalorder %s210, %s212
      %p216 = scmp.eq.s32.totalorder %s24, 0
      %p217 = por %p215, %p216
      %p218 = scmp.ne.s32.totalorder %s210, %s212
      %p219 = scmp.eq.s32.totalorder %s29, 1
      %p220 = por %p218, %p219
      %p221 = scmp.ne.s32.totalorder %s212, %s213
      %p222 = scmp.eq.s32.totalorder %s29, 0
      %p223 = por %p221, %p222
      %p224 = scmp.ne.s32.totalorder %s212, %s213
      %p225 = scmp.eq.s32.totalorder %s30, 1
      %p226 = por %p224, %p225
      %p228 = scmp.ne.s32.totalorder %s213, %s227
      %p229 = scmp.eq.s32.totalorder %s30, 0
      %p230 = por %p228, %p229
      %s231 = ssub.s32 %s24, %s31
      %p232 = scmp.eq.s32.totalorder %s231, 0
      %s234 = sadd.s32 %s233, 1
      %s235 = scalar_select %p232, %s233, %s234
      %p238 = pneg %p232
      %p239 = scmp.eq.s32.totalorder %s24, 1
      %p240 = por %p238, %p239
      %p241 = scmp.ne.s32.totalorder %s233, %s236
      %p242 = scmp.eq.s32.totalorder %s24, 0
      %p243 = por %p241, %p242
      %p244 = scmp.ne.s32.totalorder %s233, %s236
      %p245 = scmp.eq.s32.totalorder %s29, 1
      %p246 = por %p244, %p245
      %p247 = scmp.ne.s32.totalorder %s236, %s237
      %p248 = scmp.eq.s32.totalorder %s29, 0
      %p249 = por %p247, %p248
      %p250 = scmp.ne.s32.totalorder %s236, %s237
      %p251 = scmp.eq.s32.totalorder %s30, 1
      %p252 = por %p250, %p251
      %p254 = scmp.ne.s32.totalorder %s237, %s253
      %p255 = scmp.eq.s32.totalorder %s30, 0
      %p256 = por %p254, %p255
      %p257 = scmp.le.s32.totalorder 1, %s24
      %p258 = scmp.lt.s32.totalorder %s24, 3
      %p259 = pnand %p257, %p258
      %p260 = pneg %p259
      // Predicated region
      $region9: #{tpu_custom_call.1} parent=5 // pred_check
        _
      $region10: #{tpu_custom_call.1} parent=5 // pred_check_branch
        %262 = sbr.rel (%p259) target = $region12
      $region11: #{tpu_custom_call.1} parent=5 // pred_region
        %s263 = ssub.s32 %s24, 1
        // Predicated region
        $region13: #{tpu_custom_call.1} parent=11 // pred_check
          %p264 = pneg %p97
        $region14: #{tpu_custom_call.1} parent=11 // pred_check_branch
          %266 = sbr.rel (%p264) target = $region16
        $region15: #{tpu_custom_call.1} parent=11 // pred_region
          _
        $region16: #{tpu_custom_call.1} parent=11 // pred_fallthru
          _
        // Predicated region
        $region17: #{tpu_custom_call.1} parent=11 // pred_check
          %p267 = pneg %p118
        $region18: #{tpu_custom_call.1} parent=11 // pred_check_branch
          %269 = sbr.rel (%p267) target = $region20
        $region19: #{tpu_custom_call.1} parent=11 // pred_region
          _
        $region20: #{tpu_custom_call.1} parent=11 // pred_fallthru
          _
        // Predicated region
        $region21: #{tpu_custom_call.1} parent=11 // pred_check
          %p270 = pneg %p139
        $region22: #{tpu_custom_call.1} parent=11 // pred_check_branch
          %272 = sbr.rel (%p270) target = $region24
        $region23: #{tpu_custom_call.1} parent=11 // pred_region
          _
        $region24: #{tpu_custom_call.1} parent=11 // pred_fallthru
          _
        // Predicated region
        $region25: #{tpu_custom_call.1} parent=11 // pred_check
          %p273 = pneg %p160
        $region26: #{tpu_custom_call.1} parent=11 // pred_check_branch
          %275 = sbr.rel (%p273) target = $region28
        $region27: #{tpu_custom_call.1} parent=11 // pred_region
          _
        $region28: #{tpu_custom_call.1} parent=11 // pred_fallthru
          _
        // Predicated region
        $region29: #{tpu_custom_call.1} parent=11 // pred_check
          %p276 = pneg %p181
        $region30: #{tpu_custom_call.1} parent=11 // pred_check_branch
          %278 = sbr.rel (%p276) target = $region32
        $region31: #{tpu_custom_call.1} parent=11 // pred_region
          _
        $region32: #{tpu_custom_call.1} parent=11 // pred_fallthru
          _
        // Predicated region
        $region33: #{tpu_custom_call.1} parent=11 // pred_check
          %p279 = pneg %p202
        $region34: #{tpu_custom_call.1} parent=11 // pred_check_branch
          %281 = sbr.rel (%p279) target = $region36
        $region35: #{tpu_custom_call.1} parent=11 // pred_region
          _
        $region36: #{tpu_custom_call.1} parent=11 // pred_fallthru
          _
        // Predicated region
        $region37: #{tpu_custom_call.1} parent=11 // pred_check
          %p282 = pneg %p223
        $region38: #{tpu_custom_call.1} parent=11 // pred_check_branch
          %284 = sbr.rel (%p282) target = $region40
        $region39: #{tpu_custom_call.1} parent=11 // pred_region
          _
        $region40: #{tpu_custom_call.1} parent=11 // pred_fallthru
          _
      $region12: #{tpu_custom_call.1} parent=5 // pred_fallthru
        _
      %p285 = scmp.lt.s32.totalorder %s24, 2
      // Predicated region
      $region41: #{tpu_custom_call.1} parent=5 // pred_check
        %p286 = pneg %p285
      $region42: #{tpu_custom_call.1} parent=5 // pred_check_branch
        %288 = sbr.rel (%p286) target = $region44
      $region43: #{tpu_custom_call.1} parent=5 // pred_region
        // Predicated region
        $region45: #{tpu_custom_call.1} parent=43 // pred_check
          %p289 = pneg %p44
        $region46: #{tpu_custom_call.1} parent=43 // pred_check_branch
          %291 = sbr.rel (%p289) target = $region48
        $region47: #{tpu_custom_call.1} parent=43 // pred_region
          %s292 = sand.u32 %s34, 1
          %s293 = scalar_lea.sflag [#allocation3], %s292
          %s294 = sand.u32 %s34, 1
          %s295 = smul.addr %s294, 8
          %s296 = scalar_lea.vmem [#allocation2], %s295
          %s298 = ssub.s32 128, 128
          %299 = vsyncadd %s293, %s298
          %s300 = smul.addr %s24, 128
          %s301 = scalar_lea.hbm %s0, %s300
          %s303 = sshll.u32 %s296, 4
          %s304 = int_to_ptr.vmem [resolvable:$true] %s303
          %306 = dma.hbm_to_vmem [thread:$0]  %s301, 128, %s304, %s293
        $region48: #{tpu_custom_call.1} parent=43 // pred_fallthru
          _
        // Predicated region
        $region49: #{tpu_custom_call.1} parent=43 // pred_check
          %p307 = pneg %p70
        $region50: #{tpu_custom_call.1} parent=43 // pred_check_branch
          %309 = sbr.rel (%p307) target = $region52
        $region51: #{tpu_custom_call.1} parent=43 // pred_region
          %s310 = sand.u32 %s60, 1
          %s311 = scalar_lea.sflag [#allocation6], %s310
          %s312 = sand.u32 %s60, 1
          %s313 = smul.addr %s312, 8
          %s314 = scalar_lea.vmem [#allocation5], %s313
          %s316 = ssub.s32 128, 128
          %317 = vsyncadd %s311, %s316
          %s318 = smul.addr %s24, 128
          %s319 = scalar_lea.hbm %s1, %s318
          %s321 = sshll.u32 %s314, 4
          %s322 = int_to_ptr.vmem [resolvable:$true] %s321
          %324 = dma.hbm_to_vmem [thread:$0]  %s319, 128, %s322, %s311
        $region52: #{tpu_custom_call.1} parent=43 // pred_fallthru
          _
      $region44: #{tpu_custom_call.1} parent=5 // pred_fallthru
        _
      %p325 = scmp.le.s32.totalorder 1, %s24
      %p326 = scmp.lt.s32.totalorder %s24, 3
      %p327 = pnand %p325, %p326
      %p328 = pneg %p327
      // Predicated region
      $region53: #{tpu_custom_call.1} parent=5 // pred_check
        _
      $region54: #{tpu_custom_call.1} parent=5 // pred_check_branch
        %330 = sbr.rel (%p327) target = $region56
      $region55: #{tpu_custom_call.1} parent=5 // pred_region
        %s331 = ssub.s32 %s24, 1
        %s332 = sand.u32 %s37, 1
        %s333 = scalar_lea.sflag [#allocation3], %s332
        %s334 = sand.u32 %s37, 1
        %s335 = smul.addr %s334, 8
        %s336 = scalar_lea.vmem [#allocation2], %s335
        // Predicated region
        $region57: #{tpu_custom_call.1} parent=55 // pred_check
          %p337 = pneg %p50
        $region58: #{tpu_custom_call.1} parent=55 // pred_check_branch
          %339 = sbr.rel (%p337) target = $region60
        $region59: #{tpu_custom_call.1} parent=55 // pred_region
          %340 = dma.done %s333, 128
        $region60: #{tpu_custom_call.1} parent=55 // pred_fallthru
          _
        %s341 = sand.u32 %s63, 1
        %s342 = scalar_lea.sflag [#allocation6], %s341
        %s343 = sand.u32 %s63, 1
        %s344 = smul.addr %s343, 8
        %s345 = scalar_lea.vmem [#allocation5], %s344
        // Predicated region
        $region61: #{tpu_custom_call.1} parent=55 // pred_check
          %p346 = pneg %p76
        $region62: #{tpu_custom_call.1} parent=55 // pred_check_branch
          %348 = sbr.rel (%p346) target = $region64
        $region63: #{tpu_custom_call.1} parent=55 // pred_region
          %349 = dma.done %s342, 128
        $region64: #{tpu_custom_call.1} parent=55 // pred_fallthru
          _
        %s350 = sand.u32 %s37, 1
        %s351 = scalar_lea.sflag [#allocation3], %s350
        %s352 = sand.u32 %s37, 1
        %s353 = smul.addr %s352, 8
        %s354 = scalar_lea.vmem [#allocation2], %s353
        %p355 = pneg %p50
        %p356 = pneg %p47
        %s357 = sand.u32 %s63, 1
        %s358 = scalar_lea.sflag [#allocation6], %s357
        %s359 = sand.u32 %s63, 1
        %s360 = smul.addr %s359, 8
        %s361 = scalar_lea.vmem [#allocation5], %s360
        %p362 = pneg %p76
        %p363 = pneg %p73
        %p364 = pneg %p97
        %p365 = pneg %p94
        %p366 = pneg %p118
        %p367 = pneg %p115
        %p368 = pneg %p139
        %p369 = pneg %p136
        %p370 = pneg %p160
        %p371 = pneg %p157
        %p372 = pneg %p181
        %p373 = pneg %p178
        %p374 = pneg %p202
        %p375 = pneg %p199
        %p376 = pneg %p223
        %p377 = pneg %p220
        %p378 = pneg %p249
        %p379 = pneg %p246
        %s380 = sand.u32 %s236, 1
        %s381 = scalar_lea.sflag [#allocation4], %s380
        %s382 = sand.u32 %s236, 1
        %s383 = smul.addr %s382, 8
        %s384 = scalar_lea.vmem [#allocation7], %s383
        %v385 = vld [vmem:[%s336] sm:$0xff]
        %v386 = vld [vmem:[%s345] sm:$0xff]
        %v387 = vld [vmem:[%s5] sm:$0x3f]
        %vm388 = vcmask 261120
        %v389 = vsel %vm388, %v385, 0.0
        %390 = vadd.xlane.f32.xlu0 %v389
        %v391 = vpop.xlane.xlu0 %390
        %v392 = vrcp.pop 32.0
        %v393 = vmul.f32 %v391, %v392
        %v394 = vsub.f32 %v385, %v393
        %v395 = vmul.f32 %v394, %v394
        %v396 = vsel %vm388, %v395, 0.0
        %397 = vadd.xlane.f32.xlu0 %v396
        %v398 = vpop.xlane.xlu0 %397
        %v399 = vmul.f32 %v398, %v392
        %v400 = vadd.f32 %v399, 1e-05
        %v401 = vrsqrt.pop %v400
        %v402 = vmul.f32 %v394, %v401
        %v403 = vlaneseq
        %v404 = vshrl.u32 %v403, 7
        %v405 = vsub.s32 0, %v404
        %v406 = vrot.slane %v387, %v405
        %v407 = vmul.f32 %v402, %v406
        %v408 = vlaneseq
        %v409 = vshrl.u32 %v408, 7
        %v410 = vsub.s32 1, %v409
        %v411 = vrot.slane %v387, %v410
        %v412 = vadd.f32 %v407, %v411
        %v413 = vld [vmem:[%s2] sm:$0xff]
        %v414 = vld [vmem:[%s2 + $0x8] sm:$0xff]
        %v415 = vld [vmem:[%s2 + $0x10] sm:$0xff]
        %v416 = vld [vmem:[%s2 + $0x18] sm:$0xff]
        %v417 = vld [vmem:[%s3] sm:$0x1]
        %v419 = vlaneseq
        %v420 = vshrl.u32 %v419, 7
        %v421 = vsub.s32 0, %v420
        %v422 = vrot.slane %v417, %v421
        %v425 = vsel %vm388, %v412, 0
        %427 = vmatprep.subr.mxu0 0.0
        %428 = vmatpush1.msra.mxu0 %v413
        %429 = vmatprep.subr.mxu0 0.0
        %430 = vmatpush1.msra.mxu0 %v414
        %431 = vmatprep.subr.mxu0 0.0
        %432 = vmatpush1.msra.mxu0 %v415
        %433 = vmatprep.subr.mxu0 0.0
        %434 = vmatpush1.msra.mxu0 %v416
        %435 = vmatprep.subr.mxu0 0.0
        %436 = vmatpush1.msra.mxu0 0.0
        %437 = vmatprep.subr.mxu0 0.0
        %438 = vmatpush1.msra.mxu0 0.0
        %439 = vmatprep.subr.mxu0 0.0
        %440 = vmatpush1.msra.mxu0 0.0
        %441 = vmatprep.subr.mxu0 0.0
        %442 = vmatpush1.msra.mxu0 0.0
        %443 = vmatprep.subr.mxu0 0.0
        %444 = vmatpush1.msra.mxu0 0.0
        %445 = vmatprep.subr.mxu0 0.0
        %446 = vmatpush1.msra.mxu0 0.0
        %447 = vmatprep.subr.mxu0 0.0
        %448 = vmatpush1.msra.mxu0 0.0
        %449 = vmatprep.subr.mxu0 0.0
        %450 = vmatpush1.msra.mxu0 0.0
        %451 = vmatprep.subr.mxu0 0.0
        %452 = vmatpush1.msra.mxu0 0.0
        %453 = vmatprep.subr.mxu0 0.0
        %454 = vmatpush1.msra.mxu0 0.0
        %455 = vmatprep.subr.mxu0 0.0
        %456 = vmatpush1.msra.mxu0 0.0
        %457 = vmatprep.subr.mxu0 0.0
        %458 = vmatpush1.msra.mxu0 0.0
        %459 = vmatprep.subr.mxu0 0.0
        %460 = vmatpush1.msra.mxu0 0.0
        %461 = vmatprep.subr.mxu0 0.0
        %462 = vmatpush1.msra.mxu0 0.0
        %463 = vmatprep.subr.mxu0 0.0
        %464 = vmatpush1.msra.mxu0 0.0
        %465 = vmatprep.subr.mxu0 0.0
        %466 = vmatpush1.msra.mxu0 0.0
        %467 = vmatprep.subr.mxu0 0.0
        %468 = vmatpush1.msra.mxu0 0.0
        %469 = vmatprep.subr.mxu0 0.0
        %470 = vmatpush1.msra.mxu0 0.0
        %471 = vmatprep.subr.mxu0 0.0
        %472 = vmatpush1.msra.mxu0 0.0
        %473 = vmatprep.subr.mxu0 0.0
        %474 = vmatpush1.msra.mxu0 0.0
        %475 = vmatprep.subr.mxu0 0.0
        %476 = vmatpush1.msra.mxu0 0.0
        %477 = vmatprep.subr.mxu0 0.0
        %478 = vmatpush1.msra.mxu0 0.0
        %479 = vmatprep.subr.mxu0 0.0
        %480 = vmatpush1.msra.mxu0 0.0
        %481 = vmatprep.subr.mxu0 0.0
        %482 = vmatpush1.msra.mxu0 0.0
        %483 = vmatprep.subr.mxu0 0.0
        %484 = vmatpush1.msra.mxu0 0.0
        %485 = vmatprep.subr.mxu0 0.0
        %486 = vmatpush1.msra.mxu0 0.0
        %487 = vmatprep.subr.mxu0 0.0
        %488 = vmatpush1.msra.mxu0 0.0
        %489 = vmatprep.subr.mxu0 0.0
        %490 = vmatpush1.msra.mxu0 0.0
        %491 = vmatprep.mubr.f32.mxu0 0.0
        %492 = vmatmul.mubr.f32.gmra.mrb[0].mxu0 %v425
        %v493 = vpop.f32.mrb[0].mxu0
        %v494 = vadd.f32 %v422, %v493
        %v495 = vpop.f32.mrb[0].mxu0
        %496 = vdwg.mxu0
        %498 = vrot.lane.b32.xlu0 %v494, 120
        %v499 = vpop.permute.xlu0 %498
        %500 = vrot.lane.b32.xlu0 %v494, 112
        %v501 = vpop.permute.xlu0 %500
        %502 = vrot.lane.b32.xlu0 %v494, 104
        %v503 = vpop.permute.xlu0 %502
        %504 = vrot.lane.b32.xlu0 %v494, 96
        %v505 = vpop.permute.xlu0 %504
        %vm506 = vcmask 64512
        %v507 = vsel %vm506, %v494, 0
        %v509 = vsel %vm506, %v505, 0
        %511 = vmatprep.subr.mxu0 0.0
        %512 = vmatpush1.xpose.msra.mxu0 %v509
        %513 = vmatprep.subr.mxu0 0.0
        %514 = vmatpush1.xpose.msra.mxu0 0.0
        %515 = vmatprep.subr.mxu0 0.0
        %516 = vmatpush1.xpose.msra.mxu0 0.0
        %517 = vmatprep.subr.mxu0 0.0
        %518 = vmatpush1.xpose.msra.mxu0 0.0
        %519 = vmatprep.subr.mxu0 0.0
        %520 = vmatpush1.xpose.msra.mxu0 0.0
        %521 = vmatprep.subr.mxu0 0.0
        %522 = vmatpush1.xpose.msra.mxu0 0.0
        %523 = vmatprep.subr.mxu0 0.0
        %524 = vmatpush1.xpose.msra.mxu0 0.0
        %525 = vmatprep.subr.mxu0 0.0
        %526 = vmatpush1.xpose.msra.mxu0 0.0
        %527 = vmatprep.subr.mxu0 0.0
        %528 = vmatpush1.xpose.msra.mxu0 0.0
        %529 = vmatprep.subr.mxu0 0.0
        %530 = vmatpush1.xpose.msra.mxu0 0.0
        %531 = vmatprep.subr.mxu0 0.0
        %532 = vmatpush1.xpose.msra.mxu0 0.0
        %533 = vmatprep.subr.mxu0 0.0
        %534 = vmatpush1.xpose.msra.mxu0 0.0
        %535 = vmatprep.subr.mxu0 0.0
        %536 = vmatpush1.xpose.msra.mxu0 0.0
        %537 = vmatprep.subr.mxu0 0.0
        %538 = vmatpush1.xpose.msra.mxu0 0.0
        %539 = vmatprep.subr.mxu0 0.0
        %540 = vmatpush1.xpose.msra.mxu0 0.0
        %541 = vmatprep.subr.mxu0 0.0
        %542 = vmatpush1.xpose.msra.mxu0 0.0
        %543 = vmatprep.subr.mxu0 0.0
        %544 = vmatpush1.xpose.msra.mxu0 0.0
        %545 = vmatprep.subr.mxu0 0.0
        %546 = vmatpush1.xpose.msra.mxu0 0.0
        %547 = vmatprep.subr.mxu0 0.0
        %548 = vmatpush1.xpose.msra.mxu0 0.0
        %549 = vmatprep.subr.mxu0 0.0
        %550 = vmatpush1.xpose.msra.mxu0 0.0
        %551 = vmatprep.subr.mxu0 0.0
        %552 = vmatpush1.xpose.msra.mxu0 0.0
        %553 = vmatprep.subr.mxu0 0.0
        %554 = vmatpush1.xpose.msra.mxu0 0.0
        %555 = vmatprep.subr.mxu0 0.0
        %556 = vmatpush1.xpose.msra.mxu0 0.0
        %557 = vmatprep.subr.mxu0 0.0
        %558 = vmatpush1.xpose.msra.mxu0 0.0
        %559 = vmatprep.subr.mxu0 0.0
        %560 = vmatpush1.xpose.msra.mxu0 0.0
        %561 = vmatprep.subr.mxu0 0.0
        %562 = vmatpush1.xpose.msra.mxu0 0.0
        %563 = vmatprep.subr.mxu0 0.0
        %564 = vmatpush1.xpose.msra.mxu0 0.0
        %565 = vmatprep.subr.mxu0 0.0
        %566 = vmatpush1.xpose.msra.mxu0 0.0
        %567 = vmatprep.subr.mxu0 0.0
        %568 = vmatpush1.xpose.msra.mxu0 0.0
        %569 = vmatprep.subr.mxu0 0.0
        %570 = vmatpush1.xpose.msra.mxu0 0.0
        %571 = vmatprep.subr.mxu0 0.0
        %572 = vmatpush1.xpose.msra.mxu0 0.0
        %573 = vmatprep.subr.mxu0 0.0
        %574 = vmatpush1.xpose.msra.mxu0 0.0
        %575 = vmatprep.mubr.f32.mxu0 0.0
        %576 = vmatmul.mubr.f32.gmra.mrb[0].mxu0 %v507
        %v577 = vpop.f32.mrb[0].mxu0
        %v578 = vadd.f32 %v386, %v577
        %v579 = vpop.f32.mrb[0].mxu0
        %580 = vdwg.mxu0
        %581 = vrot.lane.b32.xlu0 %v499, 96
        %v582 = vpop.permute.xlu0 %581
        %v583 = vsel %vm506, %v499, 0
        %v585 = vsel %vm506, %v582, 0
        %587 = vmatprep.subr.mxu0 0.0
        %588 = vmatpush1.xpose.msra.mxu0 %v585
        %589 = vmatprep.subr.mxu0 0.0
        %590 = vmatpush1.xpose.msra.mxu0 0.0
        %591 = vmatprep.subr.mxu0 0.0
        %592 = vmatpush1.xpose.msra.mxu0 0.0
        %593 = vmatprep.subr.mxu0 0.0
        %594 = vmatpush1.xpose.msra.mxu0 0.0
        %595 = vmatprep.subr.mxu0 0.0
        %596 = vmatpush1.xpose.msra.mxu0 0.0
        %597 = vmatprep.subr.mxu0 0.0
        %598 = vmatpush1.xpose.msra.mxu0 0.0
        %599 = vmatprep.subr.mxu0 0.0
        %600 = vmatpush1.xpose.msra.mxu0 0.0
        %601 = vmatprep.subr.mxu0 0.0
        %602 = vmatpush1.xpose.msra.mxu0 0.0
        %603 = vmatprep.subr.mxu0 0.0
        %604 = vmatpush1.xpose.msra.mxu0 0.0
        %605 = vmatprep.subr.mxu0 0.0
        %606 = vmatpush1.xpose.msra.mxu0 0.0
        %607 = vmatprep.subr.mxu0 0.0
        %608 = vmatpush1.xpose.msra.mxu0 0.0
        %609 = vmatprep.subr.mxu0 0.0
        %610 = vmatpush1.xpose.msra.mxu0 0.0
        %611 = vmatprep.subr.mxu0 0.0
        %612 = vmatpush1.xpose.msra.mxu0 0.0
        %613 = vmatprep.subr.mxu0 0.0
        %614 = vmatpush1.xpose.msra.mxu0 0.0
        %615 = vmatprep.subr.mxu0 0.0
        %616 = vmatpush1.xpose.msra.mxu0 0.0
        %617 = vmatprep.subr.mxu0 0.0
        %618 = vmatpush1.xpose.msra.mxu0 0.0
        %619 = vmatprep.subr.mxu0 0.0
        %620 = vmatpush1.xpose.msra.mxu0 0.0
        %621 = vmatprep.subr.mxu0 0.0
        %622 = vmatpush1.xpose.msra.mxu0 0.0
        %623 = vmatprep.subr.mxu0 0.0
        %624 = vmatpush1.xpose.msra.mxu0 0.0
        %625 = vmatprep.subr.mxu0 0.0
        %626 = vmatpush1.xpose.msra.mxu0 0.0
        %627 = vmatprep.subr.mxu0 0.0
        %628 = vmatpush1.xpose.msra.mxu0 0.0
        %629 = vmatprep.subr.mxu0 0.0
        %630 = vmatpush1.xpose.msra.mxu0 0.0
        %631 = vmatprep.subr.mxu0 0.0
        %632 = vmatpush1.xpose.msra.mxu0 0.0
        %633 = vmatprep.subr.mxu0 0.0
        %634 = vmatpush1.xpose.msra.mxu0 0.0
        %635 = vmatprep.subr.mxu0 0.0
        %636 = vmatpush1.xpose.msra.mxu0 0.0
        %637 = vmatprep.subr.mxu0 0.0
        %638 = vmatpush1.xpose.msra.mxu0 0.0
        %639 = vmatprep.subr.mxu0 0.0
        %640 = vmatpush1.xpose.msra.mxu0 0.0
        %641 = vmatprep.subr.mxu0 0.0
        %642 = vmatpush1.xpose.msra.mxu0 0.0
        %643 = vmatprep.subr.mxu0 0.0
        %644 = vmatpush1.xpose.msra.mxu0 0.0
        %645 = vmatprep.subr.mxu0 0.0
        %646 = vmatpush1.xpose.msra.mxu0 0.0
        %647 = vmatprep.subr.mxu0 0.0
        %648 = vmatpush1.xpose.msra.mxu0 0.0
        %649 = vmatprep.subr.mxu0 0.0
        %650 = vmatpush1.xpose.msra.mxu0 0.0
        %651 = vmatprep.mubr.f32.mxu0 0.0
        %652 = vmatmul.mubr.f32.gmra.mrb[0].mxu0 %v583
        %v653 = vpop.f32.mrb[0].mxu0
        %v654 = vadd.f32 %v386, %v653
        %v655 = vpop.f32.mrb[0].mxu0
        %656 = vdwg.mxu0
        %657 = vrot.lane.b32.xlu0 %v501, 96
        %v658 = vpop.permute.xlu0 %657
        %v659 = vsel %vm506, %v501, 0
        %v661 = vsel %vm506, %v658, 0
        %663 = vmatprep.subr.mxu0 0.0
        %664 = vmatpush1.xpose.msra.mxu0 %v661
        %665 = vmatprep.subr.mxu0 0.0
        %666 = vmatpush1.xpose.msra.mxu0 0.0
        %667 = vmatprep.subr.mxu0 0.0
        %668 = vmatpush1.xpose.msra.mxu0 0.0
        %669 = vmatprep.subr.mxu0 0.0
        %670 = vmatpush1.xpose.msra.mxu0 0.0
        %671 = vmatprep.subr.mxu0 0.0
        %672 = vmatpush1.xpose.msra.mxu0 0.0
        %673 = vmatprep.subr.mxu0 0.0
        %674 = vmatpush1.xpose.msra.mxu0 0.0
        %675 = vmatprep.subr.mxu0 0.0
        %676 = vmatpush1.xpose.msra.mxu0 0.0
        %677 = vmatprep.subr.mxu0 0.0
        %678 = vmatpush1.xpose.msra.mxu0 0.0
        %679 = vmatprep.subr.mxu0 0.0
        %680 = vmatpush1.xpose.msra.mxu0 0.0
        %681 = vmatprep.subr.mxu0 0.0
        %682 = vmatpush1.xpose.msra.mxu0 0.0
        %683 = vmatprep.subr.mxu0 0.0
        %684 = vmatpush1.xpose.msra.mxu0 0.0
        %685 = vmatprep.subr.mxu0 0.0
        %686 = vmatpush1.xpose.msra.mxu0 0.0
        %687 = vmatprep.subr.mxu0 0.0
        %688 = vmatpush1.xpose.msra.mxu0 0.0
        %689 = vmatprep.subr.mxu0 0.0
        %690 = vmatpush1.xpose.msra.mxu0 0.0
        %691 = vmatprep.subr.mxu0 0.0
        %692 = vmatpush1.xpose.msra.mxu0 0.0
        %693 = vmatprep.subr.mxu0 0.0
        %694 = vmatpush1.xpose.msra.mxu0 0.0
        %695 = vmatprep.subr.mxu0 0.0
        %696 = vmatpush1.xpose.msra.mxu0 0.0
        %697 = vmatprep.subr.mxu0 0.0
        %698 = vmatpush1.xpose.msra.mxu0 0.0
        %699 = vmatprep.subr.mxu0 0.0
        %700 = vmatpush1.xpose.msra.mxu0 0.0
        %701 = vmatprep.subr.mxu0 0.0
        %702 = vmatpush1.xpose.msra.mxu0 0.0
        %703 = vmatprep.subr.mxu0 0.0
        %704 = vmatpush1.xpose.msra.mxu0 0.0
        %705 = vmatprep.subr.mxu0 0.0
        %706 = vmatpush1.xpose.msra.mxu0 0.0
        %707 = vmatprep.subr.mxu0 0.0
        %708 = vmatpush1.xpose.msra.mxu0 0.0
        %709 = vmatprep.subr.mxu0 0.0
        %710 = vmatpush1.xpose.msra.mxu0 0.0
        %711 = vmatprep.subr.mxu0 0.0
        %712 = vmatpush1.xpose.msra.mxu0 0.0
        %713 = vmatprep.subr.mxu0 0.0
        %714 = vmatpush1.xpose.msra.mxu0 0.0
        %715 = vmatprep.subr.mxu0 0.0
        %716 = vmatpush1.xpose.msra.mxu0 0.0
        %717 = vmatprep.subr.mxu0 0.0
        %718 = vmatpush1.xpose.msra.mxu0 0.0
        %719 = vmatprep.subr.mxu0 0.0
        %720 = vmatpush1.xpose.msra.mxu0 0.0
        %721 = vmatprep.subr.mxu0 0.0
        %722 = vmatpush1.xpose.msra.mxu0 0.0
        %723 = vmatprep.subr.mxu0 0.0
        %724 = vmatpush1.xpose.msra.mxu0 0.0
        %725 = vmatprep.subr.mxu0 0.0
        %726 = vmatpush1.xpose.msra.mxu0 0.0
        %727 = vmatprep.mubr.f32.mxu0 0.0
        %728 = vmatmul.mubr.f32.gmra.mrb[0].mxu0 %v659
        %v729 = vpop.f32.mrb[0].mxu0
        %v730 = vadd.f32 %v386, %v729
        %v731 = vpop.f32.mrb[0].mxu0
        %732 = vdwg.mxu0
        %733 = vrot.lane.b32.xlu0 %v503, 96
        %v734 = vpop.permute.xlu0 %733
        %v735 = vsel %vm506, %v503, 0
        %v737 = vsel %vm506, %v734, 0
        %739 = vmatprep.subr.mxu0 0.0
        %740 = vmatpush1.xpose.msra.mxu0 %v737
        %741 = vmatprep.subr.mxu0 0.0
        %742 = vmatpush1.xpose.msra.mxu0 0.0
        %743 = vmatprep.subr.mxu0 0.0
        %744 = vmatpush1.xpose.msra.mxu0 0.0
        %745 = vmatprep.subr.mxu0 0.0
        %746 = vmatpush1.xpose.msra.mxu0 0.0
        %747 = vmatprep.subr.mxu0 0.0
        %748 = vmatpush1.xpose.msra.mxu0 0.0
        %749 = vmatprep.subr.mxu0 0.0
        %750 = vmatpush1.xpose.msra.mxu0 0.0
        %751 = vmatprep.subr.mxu0 0.0
        %752 = vmatpush1.xpose.msra.mxu0 0.0
        %753 = vmatprep.subr.mxu0 0.0
        %754 = vmatpush1.xpose.msra.mxu0 0.0
        %755 = vmatprep.subr.mxu0 0.0
        %756 = vmatpush1.xpose.msra.mxu0 0.0
        %757 = vmatprep.subr.mxu0 0.0
        %758 = vmatpush1.xpose.msra.mxu0 0.0
        %759 = vmatprep.subr.mxu0 0.0
        %760 = vmatpush1.xpose.msra.mxu0 0.0
        %761 = vmatprep.subr.mxu0 0.0
        %762 = vmatpush1.xpose.msra.mxu0 0.0
        %763 = vmatprep.subr.mxu0 0.0
        %764 = vmatpush1.xpose.msra.mxu0 0.0
        %765 = vmatprep.subr.mxu0 0.0
        %766 = vmatpush1.xpose.msra.mxu0 0.0
        %767 = vmatprep.subr.mxu0 0.0
        %768 = vmatpush1.xpose.msra.mxu0 0.0
        %769 = vmatprep.subr.mxu0 0.0
        %770 = vmatpush1.xpose.msra.mxu0 0.0
        %771 = vmatprep.subr.mxu0 0.0
        %772 = vmatpush1.xpose.msra.mxu0 0.0
        %773 = vmatprep.subr.mxu0 0.0
        %774 = vmatpush1.xpose.msra.mxu0 0.0
        %775 = vmatprep.subr.mxu0 0.0
        %776 = vmatpush1.xpose.msra.mxu0 0.0
        %777 = vmatprep.subr.mxu0 0.0
        %778 = vmatpush1.xpose.msra.mxu0 0.0
        %779 = vmatprep.subr.mxu0 0.0
        %780 = vmatpush1.xpose.msra.mxu0 0.0
        %781 = vmatprep.subr.mxu0 0.0
        %782 = vmatpush1.xpose.msra.mxu0 0.0
        %783 = vmatprep.subr.mxu0 0.0
        %784 = vmatpush1.xpose.msra.mxu0 0.0
        %785 = vmatprep.subr.mxu0 0.0
        %786 = vmatpush1.xpose.msra.mxu0 0.0
        %787 = vmatprep.subr.mxu0 0.0
        %788 = vmatpush1.xpose.msra.mxu0 0.0
        %789 = vmatprep.subr.mxu0 0.0
        %790 = vmatpush1.xpose.msra.mxu0 0.0
        %791 = vmatprep.subr.mxu0 0.0
        %792 = vmatpush1.xpose.msra.mxu0 0.0
        %793 = vmatprep.subr.mxu0 0.0
        %794 = vmatpush1.xpose.msra.mxu0 0.0
        %795 = vmatprep.subr.mxu0 0.0
        %796 = vmatpush1.xpose.msra.mxu0 0.0
        %797 = vmatprep.subr.mxu0 0.0
        %798 = vmatpush1.xpose.msra.mxu0 0.0
        %799 = vmatprep.subr.mxu0 0.0
        %800 = vmatpush1.xpose.msra.mxu0 0.0
        %801 = vmatprep.subr.mxu0 0.0
        %802 = vmatpush1.xpose.msra.mxu0 0.0
        %803 = vmatprep.mubr.f32.mxu0 0.0
        %804 = vmatmul.mubr.f32.gmra.mrb[0].mxu0 %v735
        %v805 = vpop.f32.mrb[0].mxu0
        %v806 = vadd.f32 %v386, %v805
        %v807 = vpop.f32.mrb[0].mxu0
        %808 = vdwg.mxu0
        %v809 = vsel %vm506, %v578, -inf
        %810 = vmax.xlane.f32.xlu0 %v809
        %v811 = vpop.xlane.xlu0 %810
        %v812 = vsel %vm506, %v654, -inf
        %813 = vmax.xlane.f32.xlu0 %v812
        %v814 = vpop.xlane.xlu0 %813
        %v815 = vsel %vm506, %v730, -inf
        %816 = vmax.xlane.f32.xlu0 %v815
        %v817 = vpop.xlane.xlu0 %816
        %v818 = vsel %vm506, %v806, -inf
        %819 = vmax.xlane.f32.xlu0 %v818
        %v820 = vpop.xlane.xlu0 %819
        %v821 = vsub.f32 %v578, %v811
        %v822 = vsub.f32 %v654, %v814
        %v823 = vsub.f32 %v730, %v817
        %v824 = vsub.f32 %v806, %v820
        %v825 = vmul.f32 %v821, 1.442695
        %v826 = vpow.pop %v825
        %v827 = vmul.f32 %v822, 1.442695
        %v828 = vpow.pop %v827
        %v829 = vmul.f32 %v823, 1.442695
        %v830 = vpow.pop %v829
        %v831 = vmul.f32 %v824, 1.442695
        %v832 = vpow.pop %v831
        %v833 = vsel %vm506, %v826, 0.0
        %834 = vadd.xlane.f32.xlu0 %v833
        %v835 = vpop.xlane.xlu0 %834
        %v836 = vsel %vm506, %v828, 0.0
        %837 = vadd.xlane.f32.xlu0 %v836
        %v838 = vpop.xlane.xlu0 %837
        %v839 = vsel %vm506, %v830, 0.0
        %840 = vadd.xlane.f32.xlu0 %v839
        %v841 = vpop.xlane.xlu0 %840
        %v842 = vsel %vm506, %v832, 0.0
        %843 = vadd.xlane.f32.xlu0 %v842
        %v844 = vpop.xlane.xlu0 %843
        %v845 = vrcp.pop %v835
        %v846 = vrcp.pop %v838
        %v847 = vrcp.pop %v841
        %v848 = vrcp.pop %v844
        %v849 = vmul.f32 %v826, %v845
        %v850 = vmul.f32 %v828, %v846
        %v851 = vmul.f32 %v830, %v847
        %v852 = vmul.f32 %v832, %v848
        %853 = vrot.lane.b32.xlu0 %v494, 64
        %v854 = vpop.permute.xlu0 %853
        %v857 = vsel %vm506, %v849, 0
        %859 = vmatprep.subr.mxu0 0.0
        %860 = vmatpush1.msra.mxu0 %v854
        %861 = vmatprep.subr.mxu0 0.0
        %862 = vmatpush1.msra.mxu0 0.0
        %863 = vmatprep.subr.mxu0 0.0
        %864 = vmatpush1.msra.mxu0 0.0
        %865 = vmatprep.subr.mxu0 0.0
        %866 = vmatpush1.msra.mxu0 0.0
        %867 = vmatprep.subr.mxu0 0.0
        %868 = vmatpush1.msra.mxu0 0.0
        %869 = vmatprep.subr.mxu0 0.0
        %870 = vmatpush1.msra.mxu0 0.0
        %871 = vmatprep.subr.mxu0 0.0
        %872 = vmatpush1.msra.mxu0 0.0
        %873 = vmatprep.subr.mxu0 0.0
        %874 = vmatpush1.msra.mxu0 0.0
        %875 = vmatprep.subr.mxu0 0.0
        %876 = vmatpush1.msra.mxu0 0.0
        %877 = vmatprep.subr.mxu0 0.0
        %878 = vmatpush1.msra.mxu0 0.0
        %879 = vmatprep.subr.mxu0 0.0
        %880 = vmatpush1.msra.mxu0 0.0
        %881 = vmatprep.subr.mxu0 0.0
        %882 = vmatpush1.msra.mxu0 0.0
        %883 = vmatprep.subr.mxu0 0.0
        %884 = vmatpush1.msra.mxu0 0.0
        %885 = vmatprep.subr.mxu0 0.0
        %886 = vmatpush1.msra.mxu0 0.0
        %887 = vmatprep.subr.mxu0 0.0
        %888 = vmatpush1.msra.mxu0 0.0
        %889 = vmatprep.subr.mxu0 0.0
        %890 = vmatpush1.msra.mxu0 0.0
        %891 = vmatprep.subr.mxu0 0.0
        %892 = vmatpush1.msra.mxu0 0.0
        %893 = vmatprep.subr.mxu0 0.0
        %894 = vmatpush1.msra.mxu0 0.0
        %895 = vmatprep.subr.mxu0 0.0
        %896 = vmatpush1.msra.mxu0 0.0
        %897 = vmatprep.subr.mxu0 0.0
        %898 = vmatpush1.msra.mxu0 0.0
        %899 = vmatprep.subr.mxu0 0.0
        %900 = vmatpush1.msra.mxu0 0.0
        %901 = vmatprep.subr.mxu0 0.0
        %902 = vmatpush1.msra.mxu0 0.0
        %903 = vmatprep.subr.mxu0 0.0
        %904 = vmatpush1.msra.mxu0 0.0
        %905 = vmatprep.subr.mxu0 0.0
        %906 = vmatpush1.msra.mxu0 0.0
        %907 = vmatprep.subr.mxu0 0.0
        %908 = vmatpush1.msra.mxu0 0.0
        %909 = vmatprep.subr.mxu0 0.0
        %910 = vmatpush1.msra.mxu0 0.0
        %911 = vmatprep.subr.mxu0 0.0
        %912 = vmatpush1.msra.mxu0 0.0
        %913 = vmatprep.subr.mxu0 0.0
        %914 = vmatpush1.msra.mxu0 0.0
        %915 = vmatprep.subr.mxu0 0.0
        %916 = vmatpush1.msra.mxu0 0.0
        %917 = vmatprep.subr.mxu0 0.0
        %918 = vmatpush1.msra.mxu0 0.0
        %919 = vmatprep.subr.mxu0 0.0
        %920 = vmatpush1.msra.mxu0 0.0
        %921 = vmatprep.subr.mxu0 0.0
        %922 = vmatpush1.msra.mxu0 0.0
        %923 = vmatprep.mubr.f32.mxu0 0.0
        %924 = vmatmul.mubr.f32.gmra.mrb[0].mxu0 %v857
        %v925 = vpop.f32.mrb[0].mxu0
        %v926 = vadd.f32 0.0, %v925
        %v927 = vpop.f32.mrb[0].mxu0
        %928 = vdwg.mxu0
        %929 = vrot.lane.b32.xlu0 %v499, 64
        %v930 = vpop.permute.xlu0 %929
        %v933 = vsel %vm506, %v850, 0
        %935 = vmatprep.subr.mxu0 0.0
        %936 = vmatpush1.msra.mxu0 %v930
        %937 = vmatprep.subr.mxu0 0.0
        %938 = vmatpush1.msra.mxu0 0.0
        %939 = vmatprep.subr.mxu0 0.0
        %940 = vmatpush1.msra.mxu0 0.0
        %941 = vmatprep.subr.mxu0 0.0
        %942 = vmatpush1.msra.mxu0 0.0
        %943 = vmatprep.subr.mxu0 0.0
        %944 = vmatpush1.msra.mxu0 0.0
        %945 = vmatprep.subr.mxu0 0.0
        %946 = vmatpush1.msra.mxu0 0.0
        %947 = vmatprep.subr.mxu0 0.0
        %948 = vmatpush1.msra.mxu0 0.0
        %949 = vmatprep.subr.mxu0 0.0
        %950 = vmatpush1.msra.mxu0 0.0
        %951 = vmatprep.subr.mxu0 0.0
        %952 = vmatpush1.msra.mxu0 0.0
        %953 = vmatprep.subr.mxu0 0.0
        %954 = vmatpush1.msra.mxu0 0.0
        %955 = vmatprep.subr.mxu0 0.0
        %956 = vmatpush1.msra.mxu0 0.0
        %957 = vmatprep.subr.mxu0 0.0
        %958 = vmatpush1.msra.mxu0 0.0
        %959 = vmatprep.subr.mxu0 0.0
        %960 = vmatpush1.msra.mxu0 0.0
        %961 = vmatprep.subr.mxu0 0.0
        %962 = vmatpush1.msra.mxu0 0.0
        %963 = vmatprep.subr.mxu0 0.0
        %964 = vmatpush1.msra.mxu0 0.0
        %965 = vmatprep.subr.mxu0 0.0
        %966 = vmatpush1.msra.mxu0 0.0
        %967 = vmatprep.subr.mxu0 0.0
        %968 = vmatpush1.msra.mxu0 0.0
        %969 = vmatprep.subr.mxu0 0.0
        %970 = vmatpush1.msra.mxu0 0.0
        %971 = vmatprep.subr.mxu0 0.0
        %972 = vmatpush1.msra.mxu0 0.0
        %973 = vmatprep.subr.mxu0 0.0
        %974 = vmatpush1.msra.mxu0 0.0
        %975 = vmatprep.subr.mxu0 0.0
        %976 = vmatpush1.msra.mxu0 0.0
        %977 = vmatprep.subr.mxu0 0.0
        %978 = vmatpush1.msra.mxu0 0.0
        %979 = vmatprep.subr.mxu0 0.0
        %980 = vmatpush1.msra.mxu0 0.0
        %981 = vmatprep.subr.mxu0 0.0
        %982 = vmatpush1.msra.mxu0 0.0
        %983 = vmatprep.subr.mxu0 0.0
        %984 = vmatpush1.msra.mxu0 0.0
        %985 = vmatprep.subr.mxu0 0.0
        %986 = vmatpush1.msra.mxu0 0.0
        %987 = vmatprep.subr.mxu0 0.0
        %988 = vmatpush1.msra.mxu0 0.0
        %989 = vmatprep.subr.mxu0 0.0
        %990 = vmatpush1.msra.mxu0 0.0
        %991 = vmatprep.subr.mxu0 0.0
        %992 = vmatpush1.msra.mxu0 0.0
        %993 = vmatprep.subr.mxu0 0.0
        %994 = vmatpush1.msra.mxu0 0.0
        %995 = vmatprep.subr.mxu0 0.0
        %996 = vmatpush1.msra.mxu0 0.0
        %997 = vmatprep.subr.mxu0 0.0
        %998 = vmatpush1.msra.mxu0 0.0
        %999 = vmatprep.mubr.f32.mxu0 0.0
        %1000 = vmatmul.mubr.f32.gmra.mrb[0].mxu0 %v933
        %v1001 = vpop.f32.mrb[0].mxu0
        %v1002 = vadd.f32 0.0, %v1001
        %v1003 = vpop.f32.mrb[0].mxu0
        %1004 = vdwg.mxu0
        %1005 = vrot.lane.b32.xlu0 %v501, 64
        %v1006 = vpop.permute.xlu0 %1005
        %v1009 = vsel %vm506, %v851, 0
        %1011 = vmatprep.subr.mxu0 0.0
        %1012 = vmatpush1.msra.mxu0 %v1006
        %1013 = vmatprep.subr.mxu0 0.0
        %1014 = vmatpush1.msra.mxu0 0.0
        %1015 = vmatprep.subr.mxu0 0.0
        %1016 = vmatpush1.msra.mxu0 0.0
        %1017 = vmatprep.subr.mxu0 0.0
        %1018 = vmatpush1.msra.mxu0 0.0
        %1019 = vmatprep.subr.mxu0 0.0
        %1020 = vmatpush1.msra.mxu0 0.0
        %1021 = vmatprep.subr.mxu0 0.0
        %1022 = vmatpush1.msra.mxu0 0.0
        %1023 = vmatprep.subr.mxu0 0.0
        %1024 = vmatpush1.msra.mxu0 0.0
        %1025 = vmatprep.subr.mxu0 0.0
        %1026 = vmatpush1.msra.mxu0 0.0
        %1027 = vmatprep.subr.mxu0 0.0
        %1028 = vmatpush1.msra.mxu0 0.0
        %1029 = vmatprep.subr.mxu0 0.0
        %1030 = vmatpush1.msra.mxu0 0.0
        %1031 = vmatprep.subr.mxu0 0.0
        %1032 = vmatpush1.msra.mxu0 0.0
        %1033 = vmatprep.subr.mxu0 0.0
        %1034 = vmatpush1.msra.mxu0 0.0
        %1035 = vmatprep.subr.mxu0 0.0
        %1036 = vmatpush1.msra.mxu0 0.0
        %1037 = vmatprep.subr.mxu0 0.0
        %1038 = vmatpush1.msra.mxu0 0.0
        %1039 = vmatprep.subr.mxu0 0.0
        %1040 = vmatpush1.msra.mxu0 0.0
        %1041 = vmatprep.subr.mxu0 0.0
        %1042 = vmatpush1.msra.mxu0 0.0
        %1043 = vmatprep.subr.mxu0 0.0
        %1044 = vmatpush1.msra.mxu0 0.0
        %1045 = vmatprep.subr.mxu0 0.0
        %1046 = vmatpush1.msra.mxu0 0.0
        %1047 = vmatprep.subr.mxu0 0.0
        %1048 = vmatpush1.msra.mxu0 0.0
        %1049 = vmatprep.subr.mxu0 0.0
        %1050 = vmatpush1.msra.mxu0 0.0
        %1051 = vmatprep.subr.mxu0 0.0
        %1052 = vmatpush1.msra.mxu0 0.0
        %1053 = vmatprep.subr.mxu0 0.0
        %1054 = vmatpush1.msra.mxu0 0.0
        %1055 = vmatprep.subr.mxu0 0.0
        %1056 = vmatpush1.msra.mxu0 0.0
        %1057 = vmatprep.subr.mxu0 0.0
        %1058 = vmatpush1.msra.mxu0 0.0
        %1059 = vmatprep.subr.mxu0 0.0
        %1060 = vmatpush1.msra.mxu0 0.0
        %1061 = vmatprep.subr.mxu0 0.0
        %1062 = vmatpush1.msra.mxu0 0.0
        %1063 = vmatprep.subr.mxu0 0.0
        %1064 = vmatpush1.msra.mxu0 0.0
        %1065 = vmatprep.subr.mxu0 0.0
        %1066 = vmatpush1.msra.mxu0 0.0
        %1067 = vmatprep.subr.mxu0 0.0
        %1068 = vmatpush1.msra.mxu0 0.0
        %1069 = vmatprep.subr.mxu0 0.0
        %1070 = vmatpush1.msra.mxu0 0.0
        %1071 = vmatprep.subr.mxu0 0.0
        %1072 = vmatpush1.msra.mxu0 0.0
        %1073 = vmatprep.subr.mxu0 0.0
        %1074 = vmatpush1.msra.mxu0 0.0
        %1075 = vmatprep.mubr.f32.mxu0 0.0
        %1076 = vmatmul.mubr.f32.gmra.mrb[0].mxu0 %v1009
        %v1077 = vpop.f32.mrb[0].mxu0
        %v1078 = vadd.f32 0.0, %v1077
        %v1079 = vpop.f32.mrb[0].mxu0
        %1080 = vdwg.mxu0
        %1081 = vrot.lane.b32.xlu0 %v503, 64
        %v1082 = vpop.permute.xlu0 %1081
        %v1085 = vsel %vm506, %v852, 0
        %1087 = vmatprep.subr.mxu0 0.0
        %1088 = vmatpush1.msra.mxu0 %v1082
        %1089 = vmatprep.subr.mxu0 0.0
        %1090 = vmatpush1.msra.mxu0 0.0
        %1091 = vmatprep.subr.mxu0 0.0
        %1092 = vmatpush1.msra.mxu0 0.0
        %1093 = vmatprep.subr.mxu0 0.0
        %1094 = vmatpush1.msra.mxu0 0.0
        %1095 = vmatprep.subr.mxu0 0.0
        %1096 = vmatpush1.msra.mxu0 0.0
        %1097 = vmatprep.subr.mxu0 0.0
        %1098 = vmatpush1.msra.mxu0 0.0
        %1099 = vmatprep.subr.mxu0 0.0
        %1100 = vmatpush1.msra.mxu0 0.0
        %1101 = vmatprep.subr.mxu0 0.0
        %1102 = vmatpush1.msra.mxu0 0.0
        %1103 = vmatprep.subr.mxu0 0.0
        %1104 = vmatpush1.msra.mxu0 0.0
        %1105 = vmatprep.subr.mxu0 0.0
        %1106 = vmatpush1.msra.mxu0 0.0
        %1107 = vmatprep.subr.mxu0 0.0
        %1108 = vmatpush1.msra.mxu0 0.0
        %1109 = vmatprep.subr.mxu0 0.0
        %1110 = vmatpush1.msra.mxu0 0.0
        %1111 = vmatprep.subr.mxu0 0.0
        %1112 = vmatpush1.msra.mxu0 0.0
        %1113 = vmatprep.subr.mxu0 0.0
        %1114 = vmatpush1.msra.mxu0 0.0
        %1115 = vmatprep.subr.mxu0 0.0
        %1116 = vmatpush1.msra.mxu0 0.0
        %1117 = vmatprep.subr.mxu0 0.0
        %1118 = vmatpush1.msra.mxu0 0.0
        %1119 = vmatprep.subr.mxu0 0.0
        %1120 = vmatpush1.msra.mxu0 0.0
        %1121 = vmatprep.subr.mxu0 0.0
        %1122 = vmatpush1.msra.mxu0 0.0
        %1123 = vmatprep.subr.mxu0 0.0
        %1124 = vmatpush1.msra.mxu0 0.0
        %1125 = vmatprep.subr.mxu0 0.0
        %1126 = vmatpush1.msra.mxu0 0.0
        %1127 = vmatprep.subr.mxu0 0.0
        %1128 = vmatpush1.msra.mxu0 0.0
        %1129 = vmatprep.subr.mxu0 0.0
        %1130 = vmatpush1.msra.mxu0 0.0
        %1131 = vmatprep.subr.mxu0 0.0
        %1132 = vmatpush1.msra.mxu0 0.0
        %1133 = vmatprep.subr.mxu0 0.0
        %1134 = vmatpush1.msra.mxu0 0.0
        %1135 = vmatprep.subr.mxu0 0.0
        %1136 = vmatpush1.msra.mxu0 0.0
        %1137 = vmatprep.subr.mxu0 0.0
        %1138 = vmatpush1.msra.mxu0 0.0
        %1139 = vmatprep.subr.mxu0 0.0
        %1140 = vmatpush1.msra.mxu0 0.0
        %1141 = vmatprep.subr.mxu0 0.0
        %1142 = vmatpush1.msra.mxu0 0.0
        %1143 = vmatprep.subr.mxu0 0.0
        %1144 = vmatpush1.msra.mxu0 0.0
        %1145 = vmatprep.subr.mxu0 0.0
        %1146 = vmatpush1.msra.mxu0 0.0
        %1147 = vmatprep.subr.mxu0 0.0
        %1148 = vmatpush1.msra.mxu0 0.0
        %1149 = vmatprep.subr.mxu0 0.0
        %1150 = vmatpush1.msra.mxu0 0.0
        %1151 = vmatprep.mubr.f32.mxu0 0.0
        %1152 = vmatmul.mubr.f32.gmra.mrb[0].mxu0 %v1085
        %v1153 = vpop.f32.mrb[0].mxu0
        %v1154 = vadd.f32 0.0, %v1153
        %v1155 = vpop.f32.mrb[0].mxu0
        %1156 = vdwg.mxu0
        %1158 = vrot.lane.b32.xlu0 %v1002, 8
        %v1159 = vpop.permute.xlu0 %1158
        %1162 = vrot.lane.b32.xlu0 %v1078, 16
        %v1163 = vpop.permute.xlu0 %1162
        %1166 = vrot.lane.b32.xlu0 %v1154, 24
        %v1167 = vpop.permute.xlu0 %1166
        %v1169 = vsel %vm506, %v926, %v1159
        %vm1170 = vcmask 130048
        %v1171 = vsel %vm1170, %v1169, %v1163
        %vm1172 = vcmask 195584
        %v1173 = vsel %vm1172, %v1171, %v1167
        %v1174 = vld [vmem:[%s4] sm:$0xff]
        %v1175 = vld [vmem:[%s4 + $0x8] sm:$0xff]
        %v1176 = vld [vmem:[%s4 + $0x10] sm:$0xff]
        %v1177 = vld [vmem:[%s4 + $0x18] sm:$0xff]
        %v1178 = vlaneseq
        %v1179 = vshrl.u32 %v1178, 7
        %v1180 = vsub.s32 2, %v1179
        %v1181 = vrot.slane %v387, %v1180
        %v1183 = vsel %vm388, %v1173, 0
        %1185 = vmatprep.subr.mxu0 0.0
        %1186 = vmatpush1.msra.mxu0 %v1174
        %1187 = vmatprep.subr.mxu0 0.0
        %1188 = vmatpush1.msra.mxu0 %v1175
        %1189 = vmatprep.subr.mxu0 0.0
        %1190 = vmatpush1.msra.mxu0 %v1176
        %1191 = vmatprep.subr.mxu0 0.0
        %1192 = vmatpush1.msra.mxu0 %v1177
        %1193 = vmatprep.subr.mxu0 0.0
        %1194 = vmatpush1.msra.mxu0 0.0
        %1195 = vmatprep.subr.mxu0 0.0
        %1196 = vmatpush1.msra.mxu0 0.0
        %1197 = vmatprep.subr.mxu0 0.0
        %1198 = vmatpush1.msra.mxu0 0.0
        %1199 = vmatprep.subr.mxu0 0.0
        %1200 = vmatpush1.msra.mxu0 0.0
        %1201 = vmatprep.subr.mxu0 0.0
        %1202 = vmatpush1.msra.mxu0 0.0
        %1203 = vmatprep.subr.mxu0 0.0
        %1204 = vmatpush1.msra.mxu0 0.0
        %1205 = vmatprep.subr.mxu0 0.0
        %1206 = vmatpush1.msra.mxu0 0.0
        %1207 = vmatprep.subr.mxu0 0.0
        %1208 = vmatpush1.msra.mxu0 0.0
        %1209 = vmatprep.subr.mxu0 0.0
        %1210 = vmatpush1.msra.mxu0 0.0
        %1211 = vmatprep.subr.mxu0 0.0
        %1212 = vmatpush1.msra.mxu0 0.0
        %1213 = vmatprep.subr.mxu0 0.0
        %1214 = vmatpush1.msra.mxu0 0.0
        %1215 = vmatprep.subr.mxu0 0.0
        %1216 = vmatpush1.msra.mxu0 0.0
        %1217 = vmatprep.subr.mxu0 0.0
        %1218 = vmatpush1.msra.mxu0 0.0
        %1219 = vmatprep.subr.mxu0 0.0
        %1220 = vmatpush1.msra.mxu0 0.0
        %1221 = vmatprep.subr.mxu0 0.0
        %1222 = vmatpush1.msra.mxu0 0.0
        %1223 = vmatprep.subr.mxu0 0.0
        %1224 = vmatpush1.msra.mxu0 0.0
        %1225 = vmatprep.subr.mxu0 0.0
        %1226 = vmatpush1.msra.mxu0 0.0
        %1227 = vmatprep.subr.mxu0 0.0
        %1228 = vmatpush1.msra.mxu0 0.0
        %1229 = vmatprep.subr.mxu0 0.0
        %1230 = vmatpush1.msra.mxu0 0.0
        %1231 = vmatprep.subr.mxu0 0.0
        %1232 = vmatpush1.msra.mxu0 0.0
        %1233 = vmatprep.subr.mxu0 0.0
        %1234 = vmatpush1.msra.mxu0 0.0
        %1235 = vmatprep.subr.mxu0 0.0
        %1236 = vmatpush1.msra.mxu0 0.0
        %1237 = vmatprep.subr.mxu0 0.0
        %1238 = vmatpush1.msra.mxu0 0.0
        %1239 = vmatprep.subr.mxu0 0.0
        %1240 = vmatpush1.msra.mxu0 0.0
        %1241 = vmatprep.subr.mxu0 0.0
        %1242 = vmatpush1.msra.mxu0 0.0
        %1243 = vmatprep.subr.mxu0 0.0
        %1244 = vmatpush1.msra.mxu0 0.0
        %1245 = vmatprep.subr.mxu0 0.0
        %1246 = vmatpush1.msra.mxu0 0.0
        %1247 = vmatprep.subr.mxu0 0.0
        %1248 = vmatpush1.msra.mxu0 0.0
        %1249 = vmatprep.mubr.f32.mxu0 0.0
        %1250 = vmatmul.mubr.f32.gmra.mrb[0].mxu0 %v1183
        %v1251 = vpop.f32.mrb[0].mxu0
        %v1252 = vadd.f32 %v1181, %v1251
        %v1253 = vpop.f32.mrb[0].mxu0
        %1254 = vdwg.mxu0
        %v1255 = vadd.f32 %v385, %v1252
        %v1256 = vsel %vm388, %v1255, 0.0
        %1257 = vadd.xlane.f32.xlu0 %v1256
        %v1258 = vpop.xlane.xlu0 %1257
        %v1259 = vmul.f32 %v1258, %v392
        %v1260 = vsub.f32 %v1255, %v1259
        %v1261 = vmul.f32 %v1260, %v1260
        %v1262 = vsel %vm388, %v1261, 0.0
        %1263 = vadd.xlane.f32.xlu0 %v1262
        %v1264 = vpop.xlane.xlu0 %1263
        %v1265 = vmul.f32 %v1264, %v392
        %v1266 = vadd.f32 %v1265, 1e-05
        %v1267 = vrsqrt.pop %v1266
        %v1268 = vmul.f32 %v1260, %v1267
        %v1269 = vlaneseq
        %v1270 = vshrl.u32 %v1269, 7
        %v1271 = vsub.s32 3, %v1270
        %v1272 = vrot.slane %v387, %v1271
        %v1273 = vmul.f32 %v1268, %v1272
        %v1274 = vlaneseq
        %v1275 = vshrl.u32 %v1274, 7
        %v1276 = vsub.s32 4, %v1275
        %v1277 = vrot.slane %v387, %v1276
        %v1278 = vadd.f32 %v1273, %v1277
        %v1279 = vld [vmem:[%s6] sm:$0xff]
        %v1280 = vld [vmem:[%s6 + $0x8] sm:$0xff]
        %v1281 = vld [vmem:[%s6 + $0x10] sm:$0xff]
        %v1282 = vld [vmem:[%s6 + $0x18] sm:$0xff]
        %v1283 = vld [vmem:[%s7] sm:$0x1]
        %v1285 = vlaneseq
        %v1286 = vshrl.u32 %v1285, 7
        %v1287 = vsub.s32 0, %v1286
        %v1288 = vrot.slane %v1283, %v1287
        %v1291 = vsel %vm388, %v1278, 0
        %1293 = vmatprep.subr.mxu0 0.0
        %1294 = vmatpush1.msra.mxu0 %v1279
        %1295 = vmatprep.subr.mxu0 0.0
        %1296 = vmatpush1.msra.mxu0 %v1280
        %1297 = vmatprep.subr.mxu0 0.0
        %1298 = vmatpush1.msra.mxu0 %v1281
        %1299 = vmatprep.subr.mxu0 0.0
        %1300 = vmatpush1.msra.mxu0 %v1282
        %1301 = vmatprep.subr.mxu0 0.0
        %1302 = vmatpush1.msra.mxu0 0.0
        %1303 = vmatprep.subr.mxu0 0.0
        %1304 = vmatpush1.msra.mxu0 0.0
        %1305 = vmatprep.subr.mxu0 0.0
        %1306 = vmatpush1.msra.mxu0 0.0
        %1307 = vmatprep.subr.mxu0 0.0
        %1308 = vmatpush1.msra.mxu0 0.0
        %1309 = vmatprep.subr.mxu0 0.0
        %1310 = vmatpush1.msra.mxu0 0.0
        %1311 = vmatprep.subr.mxu0 0.0
        %1312 = vmatpush1.msra.mxu0 0.0
        %1313 = vmatprep.subr.mxu0 0.0
        %1314 = vmatpush1.msra.mxu0 0.0
        %1315 = vmatprep.subr.mxu0 0.0
        %1316 = vmatpush1.msra.mxu0 0.0
        %1317 = vmatprep.subr.mxu0 0.0
        %1318 = vmatpush1.msra.mxu0 0.0
        %1319 = vmatprep.subr.mxu0 0.0
        %1320 = vmatpush1.msra.mxu0 0.0
        %1321 = vmatprep.subr.mxu0 0.0
        %1322 = vmatpush1.msra.mxu0 0.0
        %1323 = vmatprep.subr.mxu0 0.0
        %1324 = vmatpush1.msra.mxu0 0.0
        %1325 = vmatprep.subr.mxu0 0.0
        %1326 = vmatpush1.msra.mxu0 0.0
        %1327 = vmatprep.subr.mxu0 0.0
        %1328 = vmatpush1.msra.mxu0 0.0
        %1329 = vmatprep.subr.mxu0 0.0
        %1330 = vmatpush1.msra.mxu0 0.0
        %1331 = vmatprep.subr.mxu0 0.0
        %1332 = vmatpush1.msra.mxu0 0.0
        %1333 = vmatprep.subr.mxu0 0.0
        %1334 = vmatpush1.msra.mxu0 0.0
        %1335 = vmatprep.subr.mxu0 0.0
        %1336 = vmatpush1.msra.mxu0 0.0
        %1337 = vmatprep.subr.mxu0 0.0
        %1338 = vmatpush1.msra.mxu0 0.0
        %1339 = vmatprep.subr.mxu0 0.0
        %1340 = vmatpush1.msra.mxu0 0.0
        %1341 = vmatprep.subr.mxu0 0.0
        %1342 = vmatpush1.msra.mxu0 0.0
        %1343 = vmatprep.subr.mxu0 0.0
        %1344 = vmatpush1.msra.mxu0 0.0
        %1345 = vmatprep.subr.mxu0 0.0
        %1346 = vmatpush1.msra.mxu0 0.0
        %1347 = vmatprep.subr.mxu0 0.0
        %1348 = vmatpush1.msra.mxu0 0.0
        %1349 = vmatprep.subr.mxu0 0.0
        %1350 = vmatpush1.msra.mxu0 0.0
        %1351 = vmatprep.subr.mxu0 0.0
        %1352 = vmatpush1.msra.mxu0 0.0
        %1353 = vmatprep.subr.mxu0 0.0
        %1354 = vmatpush1.msra.mxu0 0.0
        %1355 = vmatprep.subr.mxu0 0.0
        %1356 = vmatpush1.msra.mxu0 0.0
        %1357 = vmatprep.mubr.f32.mxu0 0.0
        %1358 = vmatmul.mubr.f32.gmra.mrb[0].mxu0 %v1291
        %v1359 = vpop.f32.mrb[0].mxu0
        %v1360 = vadd.f32 %v1288, %v1359
        %v1361 = vpop.f32.mrb[0].mxu0
        %1362 = vdwg.mxu0
        %v1363 = vmax.f32 %v1360, 0.0
        %v1364 = vld [vmem:[%s8] sm:$0xff]
        %v1365 = vld [vmem:[%s8 + $0x8] sm:$0xff]
        %v1366 = vld [vmem:[%s8 + $0x10] sm:$0xff]
        %v1367 = vld [vmem:[%s8 + $0x18] sm:$0xff]
        %v1368 = vld [vmem:[%s8 + $0x20] sm:$0xff]
        %v1369 = vld [vmem:[%s8 + $0x28] sm:$0xff]
        %v1370 = vld [vmem:[%s8 + $0x30] sm:$0xff]
        %v1371 = vld [vmem:[%s8 + $0x38] sm:$0xff]
        %v1372 = vlaneseq
        %v1373 = vshrl.u32 %v1372, 7
        %v1374 = vsub.s32 5, %v1373
        %v1375 = vrot.slane %v387, %v1374
        %vm1376 = vcmask 523264
        %v1378 = vsel %vm1376, %v1363, 0
        %1380 = vmatprep.subr.mxu0 0.0
        %1381 = vmatpush1.msra.mxu0 %v1364
        %1382 = vmatprep.subr.mxu0 0.0
        %1383 = vmatpush1.msra.mxu0 %v1365
        %1384 = vmatprep.subr.mxu0 0.0
        %1385 = vmatpush1.msra.mxu0 %v1366
        %1386 = vmatprep.subr.mxu0 0.0
        %1387 = vmatpush1.msra.mxu0 %v1367
        %1388 = vmatprep.subr.mxu0 0.0
        %1389 = vmatpush1.msra.mxu0 %v1368
        %1390 = vmatprep.subr.mxu0 0.0
        %1391 = vmatpush1.msra.mxu0 %v1369
        %1392 = vmatprep.subr.mxu0 0.0
        %1393 = vmatpush1.msra.mxu0 %v1370
        %1394 = vmatprep.subr.mxu0 0.0
        %1395 = vmatpush1.msra.mxu0 %v1371
        %1396 = vmatprep.subr.mxu0 0.0
        %1397 = vmatpush1.msra.mxu0 0.0
        %1398 = vmatprep.subr.mxu0 0.0
        %1399 = vmatpush1.msra.mxu0 0.0
        %1400 = vmatprep.subr.mxu0 0.0
        %1401 = vmatpush1.msra.mxu0 0.0
        %1402 = vmatprep.subr.mxu0 0.0
        %1403 = vmatpush1.msra.mxu0 0.0
        %1404 = vmatprep.subr.mxu0 0.0
        %1405 = vmatpush1.msra.mxu0 0.0
        %1406 = vmatprep.subr.mxu0 0.0
        %1407 = vmatpush1.msra.mxu0 0.0
        %1408 = vmatprep.subr.mxu0 0.0
        %1409 = vmatpush1.msra.mxu0 0.0
        %1410 = vmatprep.subr.mxu0 0.0
        %1411 = vmatpush1.msra.mxu0 0.0
        %1412 = vmatprep.subr.mxu0 0.0
        %1413 = vmatpush1.msra.mxu0 0.0
        %1414 = vmatprep.subr.mxu0 0.0
        %1415 = vmatpush1.msra.mxu0 0.0
        %1416 = vmatprep.subr.mxu0 0.0
        %1417 = vmatpush1.msra.mxu0 0.0
        %1418 = vmatprep.subr.mxu0 0.0
        %1419 = vmatpush1.msra.mxu0 0.0
        %1420 = vmatprep.subr.mxu0 0.0
        %1421 = vmatpush1.msra.mxu0 0.0
        %1422 = vmatprep.subr.mxu0 0.0
        %1423 = vmatpush1.msra.mxu0 0.0
        %1424 = vmatprep.subr.mxu0 0.0
        %1425 = vmatpush1.msra.mxu0 0.0
        %1426 = vmatprep.subr.mxu0 0.0
        %1427 = vmatpush1.msra.mxu0 0.0
        %1428 = vmatprep.subr.mxu0 0.0
        %1429 = vmatpush1.msra.mxu0 0.0
        %1430 = vmatprep.subr.mxu0 0.0
        %1431 = vmatpush1.msra.mxu0 0.0
        %1432 = vmatprep.subr.mxu0 0.0
        %1433 = vmatpush1.msra.mxu0 0.0
        %1434 = vmatprep.subr.mxu0 0.0
        %1435 = vmatpush1.msra.mxu0 0.0
        %1436 = vmatprep.subr.mxu0 0.0
        %1437 = vmatpush1.msra.mxu0 0.0
        %1438 = vmatprep.subr.mxu0 0.0
        %1439 = vmatpush1.msra.mxu0 0.0
        %1440 = vmatprep.subr.mxu0 0.0
        %1441 = vmatpush1.msra.mxu0 0.0
        %1442 = vmatprep.subr.mxu0 0.0
        %1443 = vmatpush1.msra.mxu0 0.0
        %1444 = vmatprep.mubr.f32.mxu0 0.0
        %1445 = vmatmul.mubr.f32.gmra.mrb[0].mxu0 %v1378
        %v1446 = vpop.f32.mrb[0].mxu0
        %v1447 = vadd.f32 %v1375, %v1446
        %v1448 = vpop.f32.mrb[0].mxu0
        %1449 = vdwg.mxu0
        %v1450 = vadd.f32 %v1255, %v1447
        %1451 = vst.msk [vmem:[%s384] sm:$0xff] %vm388, %v1450
        %s1452 = sand.u32 %s236, 1
        %s1453 = scalar_lea.sflag [#allocation4], %s1452
        %s1454 = sand.u32 %s236, 1
        %s1455 = smul.addr %s1454, 8
        %s1456 = scalar_lea.vmem [#allocation7], %s1455
        // Predicated region
        $region65: #{tpu_custom_call.1} parent=55 // pred_check
          %p1457 = pneg %p246
        $region66: #{tpu_custom_call.1} parent=55 // pred_check_branch
          %1459 = sbr.rel (%p1457) target = $region68
        $region67: #{tpu_custom_call.1} parent=55 // pred_region
          %s1461 = ssub.s32 128, 128
          %1462 = vsyncadd %s1453, %s1461
          %s1463 = smul.addr %s29, 128
          %s1464 = scalar_lea.hbm %s9, %s1463
          %s1466 = sshll.u32 %s1456, 4
          %s1467 = int_to_ptr.vmem [resolvable:$true] %s1466
          %1469 = dma.vmem_to_hbm [thread:$0]  %s1467, 128, %s1464, %s1453
        $region68: #{tpu_custom_call.1} parent=55 // pred_fallthru
          _
      $region56: #{tpu_custom_call.1} parent=5 // pred_fallthru
        _
      %p1470 = scmp.le.s32.totalorder 2, %s24
      // Predicated region
      $region69: #{tpu_custom_call.1} parent=5 // pred_check
        %p1471 = pneg %p1470
      $region70: #{tpu_custom_call.1} parent=5 // pred_check_branch
        %1473 = sbr.rel (%p1471) target = $region72
      $region71: #{tpu_custom_call.1} parent=5 // pred_region
        %s1474 = ssub.s32 %s24, 2
        // Predicated region
        $region73: #{tpu_custom_call.1} parent=71 // pred_check
          %p1475 = pneg %p252
        $region74: #{tpu_custom_call.1} parent=71 // pred_check_branch
          %1477 = sbr.rel (%p1475) target = $region76
        $region75: #{tpu_custom_call.1} parent=71 // pred_region
          %s1478 = sand.u32 %s237, 1
          %s1479 = scalar_lea.sflag [#allocation4], %s1478
          %s1480 = sand.u32 %s237, 1
          %s1481 = smul.addr %s1480, 8
          %s1482 = scalar_lea.vmem [#allocation7], %s1481
          %1483 = dma.done %s1479, 128
        $region76: #{tpu_custom_call.1} parent=71 // pred_fallthru
          _
      $region72: #{tpu_custom_call.1} parent=5 // pred_fallthru
        _
    $region6: #{tpu_custom_call.1} parent=1 // loop_footer
      %s28 = sadd.s32 1, %s24
    $region7: #{tpu_custom_call.1} parent=1 // loop_footer_branch
      %23 = sbr.rel target = $region3
    $region8: #{tpu_custom_call.1} parent=1 // loop_exit
      _
    %1484 = vsyncpa [#allocation3], 1
    %s1485 = scalar_lea.sflag [#allocation3], 1
    %1486 = vsyncpa %s1485, 1
    %1487 = vsyncpa [#allocation6], 1
    %s1488 = scalar_lea.sflag [#allocation6], 1
    %1489 = vsyncpa %s1488, 1
    %1490 = vsyncpa [#allocation4], 1
    %s1491 = scalar_lea.sflag [#allocation4], 1
    %1492 = vsyncpa %s1491, 1

</llo_original>
